<compile_context>
chip_gen: v7x
topology: tpu7x:2x2x1
jax: 0.10.0
libtpu: 0.0.40
codegen_flags: <defaults>
</compile_context>

<pallas_src>
import numpy as np

import jax
import jax.numpy as jnp
from jax.experimental import pallas as pl
from jax.experimental.pallas import tpu as pltpu


# ---------------------------------------------------------------------------
# Fused network kernel: one grid step processes tb samples, fully batched.
# ---------------------------------------------------------------------------
def _lenet_kernel(x_ref, c1w_ref, c1b_ref, c2w_ref, c2b_ref,
                  f1w_ref, f1b_ref, f2w_ref, f2b_ref, f3w_ref, f3b_ref,
                  o_ref, s1_ref, s2_ref):
    f32 = jnp.float32
    tb = x_ref.shape[0] // 32          # samples in this grid step
    r32, r16 = tb * 32, tb * 16

    # ---- conv1 + bias + ReLU: all samples batched along M ----
    y = jnp.dot(x_ref[...], c1w_ref[...], preferred_element_type=f32)
    y = jnp.maximum(y + c1b_ref[...], 0.0)                       # (tb*32, 256)

    # ---- pool1 over width: even/odd output columns are the two lane halves ----
    s1_ref[pl.ds(0, r32), :] = jnp.maximum(y[:, :128], y[:, 128:])   # (tb*32, 128)
    # pad rows (only ever read by never-used "junk" output rows); keep them finite.
    s1_ref[pl.ds(r32, 8), :] = jnp.zeros((8, 128), f32)

    # ---- pool1 over height, fused with conv2's ky row shifts ----
    # pooled1 row (oh2+ky) of every sample = max of conv1 rows 2*(oh2+ky), +1.
    def p1_shift(ky):
        return jnp.maximum(s1_ref[pl.ds(2 * ky, r16, stride=2), :],
                           s1_ref[pl.ds(2 * ky + 1, r16, stride=2), :])

    # ---- conv2 + bias + ReLU: 3 ky-shifted operands lane-concat -> one matmul ----
    p1 = jnp.concatenate([p1_shift(0), p1_shift(1), p1_shift(2)], axis=-1)  # (tb*16, 384)
    z = jnp.dot(p1, c2w_ref[...], preferred_element_type=f32)
    z = jnp.maximum(z + c2b_ref[...], 0.0)                       # (tb*16, 256)

    # ---- pool2 over width (lane halves), store for strided row access ----
    s2_ref[...] = jnp.maximum(z[:, :128], z[:, 128:])            # (tb*16, 128)

    # ---- pool2 over height fused with the fc1 flatten ----
    # Row h of every sample's 6x6 pooled map = max of conv2 rows 2h, 2h+1;
    # stride-16 reads pick that row of every sample at once -> (tb, 128).
    ph = [jnp.maximum(s2_ref[pl.ds(2 * h, tb, stride=16), :],
                      s2_ref[pl.ds(2 * h + 1, tb, stride=16), :]) for h in range(6)]
    flat = jnp.concatenate(ph, axis=-1)                          # (tb, 768)

    # ---- fc1 + ReLU, fc2 + ReLU, fc3 (batched over the tb samples) ----
    a = jnp.maximum(jnp.dot(flat, f1w_ref[...], preferred_element_type=f32)
                    + f1b_ref[...], 0.0)                         # (tb, 120)
    a = jnp.maximum(jnp.dot(a, f2w_ref[...], preferred_element_type=f32)
                    + f2b_ref[...], 0.0)                         # (tb, 84)
    o_ref[...] = jnp.dot(a, f3w_ref[...], preferred_element_type=f32) + f3b_ref[...]


# ---------------------------------------------------------------------------
# One-time weight preparation (PyTorch layout -> fused-kernel layout)
# ---------------------------------------------------------------------------
def prepare_params(p):
    w1 = np.asarray(p["conv1_w"], np.float32)   # (6, 1, 3, 3)
    b1 = np.asarray(p["conv1_b"], np.float32)   # (6,)
    w2 = np.asarray(p["conv2_w"], np.float32)   # (16, 6, 3, 3)
    b2 = np.asarray(p["conv2_b"], np.float32)   # (16,)
    f1 = np.asarray(p["fc1_w"], np.float32)     # (120, 576)
    f2 = np.asarray(p["fc2_w"], np.float32)     # (84, 120)
    f3 = np.asarray(p["fc3_w"], np.float32)     # (10, 84)

    # conv1 block-Toeplitz: input lane = ky*32 + w_in,
    # output lane = (ow%2)*128 + (ow//2)*6 + co  (parity-split => lane-half pool)
    c1w = np.zeros((96, 256), np.float32)
    c1b = np.zeros((1, 256), np.float32)
    for ow in range(30):
        base = (ow % 2) * 128 + (ow // 2) * 6
        for co in range(6):
            c1b[0, base + co] = b1[co]
            for ky in range(3):
                for kx in range(3):
                    c1w[ky * 32 + ow + kx, base + co] = w1[co, 0, ky, kx]

    # conv2 block-Toeplitz: input lane = ky*128 + w*6 + ci  (w = pooled1 width idx),
    # output lane = (ow2%2)*128 + (ow2//2)*16 + co, ow2 in 0..11 (col 12 dropped by pool)
    c2w = np.zeros((384, 256), np.float32)
    c2b = np.zeros((1, 256), np.float32)
    for ow2 in range(12):
        base = (ow2 % 2) * 128 + (ow2 // 2) * 16
        for co in range(16):
            c2b[0, base + co] = b2[co]
            for ky in range(3):
                for kx in range(3):
                    for ci in range(6):
                        c2w[ky * 128 + (ow2 + kx) * 6 + ci, base + co] = w2[co, ci, ky, kx]

    # fc1: input lane = h*128 + u*16 + co; torch flatten feature = co*36 + h*6 + u
    f1w = np.zeros((768, 120), np.float32)
    for h in range(6):
        for u in range(6):
            for co in range(16):
                f1w[h * 128 + u * 16 + co, :] = f1[:, co * 36 + h * 6 + u]
    f1b = np.asarray(p["fc1_b"], np.float32)[None, :]
    f2w = np.ascontiguousarray(f2.T)
    f2b = np.asarray(p["fc2_b"], np.float32)[None, :]
    f3w = np.ascontiguousarray(f3.T)
    f3b = np.asarray(p["fc3_b"], np.float32)[None, :]

    prepped = dict(c1w=c1w, c1b=c1b, c2w=c2w, c2b=c2b, f1w=f1w, f1b=f1b,
                   f2w=f2w, f2b=f2b, f3w=f3w, f3b=f3b)
    return {k: jnp.asarray(v) for k, v in prepped.items()}


def init_params(key):
    """Deterministic PyTorch-default-like (uniform +-1/sqrt(fan_in)) init."""
    ks = jax.random.split(key, 10)

    def u(k, shape, fan_in):
        bound = 1.0 / jnp.sqrt(jnp.float32(fan_in))
        return jax.random.uniform(k, shape, jnp.float32, -bound, bound)

    return {
        "conv1_w": u(ks[0], (6, 1, 3, 3), 1 * 9),
        "conv1_b": u(ks[1], (6,), 1 * 9),
        "conv2_w": u(ks[2], (16, 6, 3, 3), 6 * 9),
        "conv2_b": u(ks[3], (16,), 6 * 9),
        "fc1_w": u(ks[4], (120, 576), 576),
        "fc1_b": u(ks[5], (120,), 576),
        "fc2_w": u(ks[6], (84, 120), 120),
        "fc2_b": u(ks[7], (84,), 120),
        "fc3_w": u(ks[8], (10, 84), 84),
        "fc3_b": u(ks[9], (10,), 84),
    }


# ---------------------------------------------------------------------------
# Forward wrapper
# ---------------------------------------------------------------------------
_W_NAMES = ("c1w", "c1b", "c2w", "c2b", "f1w", "f1b", "f2w", "f2b", "f3w", "f3b")


def _pick_tb(B):
    """Samples per grid step: as large as possible, but keep >=2 grid steps
    when the batch allows (v7x has 2 TensorCores)."""
    for t in (16, 8, 4, 2):
        if B % t == 0 and B // t >= 2:
            return t
    for t in (16, 8, 4, 2):
        if B % t == 0:
            return t
    return 1


def net_forward(prepped, x_nchw):
    """x_nchw: (B, 1, 32, 32) float32 (same convention as the PyTorch module)."""
    B = x_nchw.shape[0]
    assert x_nchw.shape[1:] == (1, 32, 32), "fc1 requires 32x32 single-channel input"
    x = x_nchw.reshape(B, 32, 32).astype(jnp.float32)

    # conv1 im2col: three ky-shifted row slabs concatenated along lanes -> (B*32, 96);
    # rows 30,31 of each sample are zero pad (their outputs are never read).
    xi = jnp.concatenate([x[:, ky:ky + 30, :] for ky in range(3)], axis=-1)  # (B, 30, 96)
    xi = jnp.pad(xi, ((0, 0), (0, 2), (0, 0))).reshape(B * 32, 96)

    tb = _pick_tb(B)
    g = B // tb
    ws = [prepped[n] for n in _W_NAMES]

    in_specs = [pl.BlockSpec((tb * 32, 96), lambda i: (i, 0))]
    for w in ws:  # full-array weight blocks, constant index => resident in VMEM
        in_specs.append(pl.BlockSpec(w.shape, lambda i, nd=w.ndim: (0,) * nd))

    flops = 2 * B * (32 * 96 * 256 + 16 * 384 * 256 + 768 * 120 + 120 * 84 + 84 * 10)
    cost = pl.CostEstimate(
        flops=flops, transcendentals=0,
        bytes_accessed=int(xi.size * 4 + sum(int(w.size) * 4 for w in ws) + B * 40))

    out = pl.pallas_call(
        _lenet_kernel,
        out_shape=jax.ShapeDtypeStruct((g, tb, 10), jnp.float32),
        grid=(g,),
        in_specs=in_specs,
        out_specs=pl.BlockSpec((None, tb, 10), lambda i: (i, 0, 0)),
        scratch_shapes=[pltpu.VMEM((tb * 32 + 8, 128), jnp.float32),  # conv1/pool1 rows
                        pltpu.VMEM((tb * 16, 128), jnp.float32)],     # conv2/pool2 rows
        compiler_params=pltpu.CompilerParams(dimension_semantics=("parallel",)),
        cost_estimate=cost,
    )(xi, *ws)
    return out.reshape(B, 10)


if __name__ == "__main__":
    params = init_params(jax.random.PRNGKey(42))
    prepped = prepare_params(params)
    # fc1 expects 16*6*6 features => input spatial must be 32x32 (LeNet-style)
    x = jax.random.normal(jax.random.PRNGKey(0), (2, 1, 32, 32), jnp.float32)
    out = jax.block_until_ready(jax.jit(net_forward)(prepped, x))
    assert out.shape == (2, 10) and out.dtype == jnp.float32
    print("KERNEL_OK")
</pallas_src>

<mosaic_0001>
module attributes {stable_mosaic.version = 11 : i64} {
  func.func @_lenet_kernel(%arg0: i32, %arg1: memref<64x96xf32, #tpu.memory_space<vmem>>, %arg2: memref<96x256xf32, #tpu.memory_space<vmem>>, %arg3: memref<1x256xf32, #tpu.memory_space<vmem>>, %arg4: memref<384x256xf32, #tpu.memory_space<vmem>>, %arg5: memref<1x256xf32, #tpu.memory_space<vmem>>, %arg6: memref<768x120xf32, #tpu.memory_space<vmem>>, %arg7: memref<1x120xf32, #tpu.memory_space<vmem>>, %arg8: memref<120x84xf32, #tpu.memory_space<vmem>>, %arg9: memref<1x84xf32, #tpu.memory_space<vmem>>, %arg10: memref<84x10xf32, #tpu.memory_space<vmem>>, %arg11: memref<1x10xf32, #tpu.memory_space<vmem>>, %arg12: memref<1x2x10xf32, #tpu.memory_space<vmem>>, %arg13: memref<72x128xf32, #tpu.memory_space<vmem>>, %arg14: memref<32x128xf32, #tpu.memory_space<vmem>>) attributes {dimension_semantics = [#tpu.dimension_semantics<parallel>], iteration_bounds = array<i64: 1>, scalar_prefetch = 0 : i64, scratch_operands = 2 : i64, tpu.core_type = #tpu.core_type<tc>, window_params = [{transform_indices = @transform_0, window_bounds = array<i64: 64, 96>}, {pipeline_mode = #tpu.pipeline_mode<synchronous>, transform_indices = @transform_1, window_bounds = array<i64: 96, 256>}, {pipeline_mode = #tpu.pipeline_mode<synchronous>, transform_indices = @transform_2, window_bounds = array<i64: 1, 256>}, {pipeline_mode = #tpu.pipeline_mode<synchronous>, transform_indices = @transform_3, window_bounds = array<i64: 384, 256>}, {pipeline_mode = #tpu.pipeline_mode<synchronous>, transform_indices = @transform_4, window_bounds = array<i64: 1, 256>}, {pipeline_mode = #tpu.pipeline_mode<synchronous>, transform_indices = @transform_5, window_bounds = array<i64: 768, 120>}, {pipeline_mode = #tpu.pipeline_mode<synchronous>, transform_indices = @transform_6, window_bounds = array<i64: 1, 120>}, {pipeline_mode = #tpu.pipeline_mode<synchronous>, transform_indices = @transform_7, window_bounds = array<i64: 120, 84>}, {pipeline_mode = #tpu.pipeline_mode<synchronous>, transform_indices = @transform_8, window_bounds = array<i64: 1, 84>}, {pipeline_mode = #tpu.pipeline_mode<synchronous>, transform_indices = @transform_9, window_bounds = array<i64: 84, 10>}, {pipeline_mode = #tpu.pipeline_mode<synchronous>, transform_indices = @transform_10, window_bounds = array<i64: 1, 10>}, {transform_indices = @transform_11, window_bounds = array<i64: 1, 2, 10>}]} {
    %c0 = arith.constant 0 : index
    %c0_0 = arith.constant 0 : index
    %0 = vector.load %arg1[%c0, %c0_0] : memref<64x96xf32, #tpu.memory_space<vmem>>, vector<64x96xf32>
    %c0_1 = arith.constant 0 : index
    %c0_2 = arith.constant 0 : index
    %1 = vector.load %arg2[%c0_1, %c0_2] : memref<96x256xf32, #tpu.memory_space<vmem>>, vector<96x256xf32>
    %cst = arith.constant dense<0.000000e+00> : vector<64x256xf32>
    %2 = tpu.matmul %0, %1, %cst {dimension_numbers = #tpu.dot_dimension_numbers<[1], [0], [0], [1], [0, 0, 1, 1], [], []>} : vector<64x96xf32>, vector<96x256xf32>, vector<64x256xf32> -> vector<64x256xf32>
    %c0_3 = arith.constant 0 : index
    %c0_4 = arith.constant 0 : index
    %3 = vector.load %arg3[%c0_3, %c0_4] : memref<1x256xf32, #tpu.memory_space<vmem>>, vector<1x256xf32>
    %4 = vector.broadcast %3 : vector<1x256xf32> to vector<64x256xf32>
    %5 = arith.addf %2, %4 : vector<64x256xf32>
    %cst_5 = arith.constant 0.000000e+00 : f32
    %6 = vector.broadcast %cst_5 : f32 to vector<64x256xf32>
    %7 = arith.maximumf %5, %6 : vector<64x256xf32>
    %8 = vector.extract_strided_slice %7 {offsets = [0, 0], sizes = [64, 128], strides = [1, 1]} : vector<64x256xf32> to vector<64x128xf32>
    %9 = vector.extract_strided_slice %7 {offsets = [0, 128], sizes = [64, 128], strides = [1, 1]} : vector<64x256xf32> to vector<64x128xf32>
    %10 = arith.maximumf %8, %9 : vector<64x128xf32>
    %c0_6 = arith.constant 0 : index
    %c0_7 = arith.constant 0 : index
    %11 = vector.load %arg13[%c0_6, %c0_7] : memref<72x128xf32, #tpu.memory_space<vmem>>, vector<64x128xf32>
    tpu.vector_store %arg13[%c0_6, %c0_7], %10 {strides = array<i32>} : memref<72x128xf32, #tpu.memory_space<vmem>>, vector<64x128xf32>,
    %cst_8 = arith.constant 0.000000e+00 : f32
    %12 = vector.broadcast %cst_8 : f32 to vector<8x128xf32>
    %c64 = arith.constant 64 : index
    %c0_9 = arith.constant 0 : index
    %13 = vector.load %arg13[%c64, %c0_9] : memref<72x128xf32, #tpu.memory_space<vmem>>, vector<8x128xf32>
    tpu.vector_store %arg13[%c64, %c0_9], %12 {strides = array<i32>} : memref<72x128xf32, #tpu.memory_space<vmem>>, vector<8x128xf32>,
    %c0_10 = arith.constant 0 : index
    %c0_11 = arith.constant 0 : index
    %14 = tpu.strided_load %arg13[%c0_10, %c0_11] {strides = array<i32: 2, 1>} : memref<72x128xf32, #tpu.memory_space<vmem>>, vector<32x128xf32>
    %c1 = arith.constant 1 : index
    %c0_12 = arith.constant 0 : index
    %15 = tpu.strided_load %arg13[%c1, %c0_12] {strides = array<i32: 2, 1>} : memref<72x128xf32, #tpu.memory_space<vmem>>, vector<32x128xf32>
    %16 = arith.maximumf %14, %15 : vector<32x128xf32>
    %c2 = arith.constant 2 : index
    %c0_13 = arith.constant 0 : index
    %17 = tpu.strided_load %arg13[%c2, %c0_13] {strides = array<i32: 2, 1>} : memref<72x128xf32, #tpu.memory_space<vmem>>, vector<32x128xf32>
    %c3 = arith.constant 3 : index
    %c0_14 = arith.constant 0 : index
    %18 = tpu.strided_load %arg13[%c3, %c0_14] {strides = array<i32: 2, 1>} : memref<72x128xf32, #tpu.memory_space<vmem>>, vector<32x128xf32>
    %19 = arith.maximumf %17, %18 : vector<32x128xf32>
    %c4 = arith.constant 4 : index
    %c0_15 = arith.constant 0 : index
    %20 = tpu.strided_load %arg13[%c4, %c0_15] {strides = array<i32: 2, 1>} : memref<72x128xf32, #tpu.memory_space<vmem>>, vector<32x128xf32>
    %c5 = arith.constant 5 : index
    %c0_16 = arith.constant 0 : index
    %21 = tpu.strided_load %arg13[%c5, %c0_16] {strides = array<i32: 2, 1>} : memref<72x128xf32, #tpu.memory_space<vmem>>, vector<32x128xf32>
    %22 = arith.maximumf %20, %21 : vector<32x128xf32>
    %23 = tpu.concatenate %16, %19, %22 in 1 : vector<32x128xf32>, vector<32x128xf32>, vector<32x128xf32> -> vector<32x384xf32>
    %c0_17 = arith.constant 0 : index
    %c0_18 = arith.constant 0 : index
    %24 = vector.load %arg4[%c0_17, %c0_18] : memref<384x256xf32, #tpu.memory_space<vmem>>, vector<384x256xf32>
    %cst_19 = arith.constant dense<0.000000e+00> : vector<32x256xf32>
    %25 = tpu.matmul %23, %24, %cst_19 {dimension_numbers = #tpu.dot_dimension_numbers<[1], [0], [0], [1], [0, 0, 1, 1], [], []>} : vector<32x384xf32>, vector<384x256xf32>, vector<32x256xf32> -> vector<32x256xf32>
    %c0_20 = arith.constant 0 : index
    %c0_21 = arith.constant 0 : index
    %26 = vector.load %arg5[%c0_20, %c0_21] : memref<1x256xf32, #tpu.memory_space<vmem>>, vector<1x256xf32>
    %27 = vector.broadcast %26 : vector<1x256xf32> to vector<32x256xf32>
    %28 = arith.addf %25, %27 : vector<32x256xf32>
    %cst_22 = arith.constant 0.000000e+00 : f32
    %29 = vector.broadcast %cst_22 : f32 to vector<32x256xf32>
    %30 = arith.maximumf %28, %29 : vector<32x256xf32>
    %31 = vector.extract_strided_slice %30 {offsets = [0, 0], sizes = [32, 128], strides = [1, 1]} : vector<32x256xf32> to vector<32x128xf32>
    %32 = vector.extract_strided_slice %30 {offsets = [0, 128], sizes = [32, 128], strides = [1, 1]} : vector<32x256xf32> to vector<32x128xf32>
    %33 = arith.maximumf %31, %32 : vector<32x128xf32>
    %c0_23 = arith.constant 0 : index
    %c0_24 = arith.constant 0 : index
    %34 = vector.load %arg14[%c0_23, %c0_24] : memref<32x128xf32, #tpu.memory_space<vmem>>, vector<32x128xf32>
    tpu.vector_store %arg14[%c0_23, %c0_24], %33 {strides = array<i32>} : memref<32x128xf32, #tpu.memory_space<vmem>>, vector<32x128xf32>,
    %c0_25 = arith.constant 0 : index
    %c0_26 = arith.constant 0 : index
    %35 = tpu.strided_load %arg14[%c0_25, %c0_26] {strides = array<i32: 16, 1>} : memref<32x128xf32, #tpu.memory_space<vmem>>, vector<2x128xf32>
    %c1_27 = arith.constant 1 : index
    %c0_28 = arith.constant 0 : index
    %36 = tpu.strided_load %arg14[%c1_27, %c0_28] {strides = array<i32: 16, 1>} : memref<32x128xf32, #tpu.memory_space<vmem>>, vector<2x128xf32>
    %37 = arith.maximumf %35, %36 : vector<2x128xf32>
    %c2_29 = arith.constant 2 : index
    %c0_30 = arith.constant 0 : index
    %38 = tpu.strided_load %arg14[%c2_29, %c0_30] {strides = array<i32: 16, 1>} : memref<32x128xf32, #tpu.memory_space<vmem>>, vector<2x128xf32>
    %c3_31 = arith.constant 3 : index
    %c0_32 = arith.constant 0 : index
    %39 = tpu.strided_load %arg14[%c3_31, %c0_32] {strides = array<i32: 16, 1>} : memref<32x128xf32, #tpu.memory_space<vmem>>, vector<2x128xf32>
    %40 = arith.maximumf %38, %39 : vector<2x128xf32>
    %c4_33 = arith.constant 4 : index
    %c0_34 = arith.constant 0 : index
    %41 = tpu.strided_load %arg14[%c4_33, %c0_34] {strides = array<i32: 16, 1>} : memref<32x128xf32, #tpu.memory_space<vmem>>, vector<2x128xf32>
    %c5_35 = arith.constant 5 : index
    %c0_36 = arith.constant 0 : index
    %42 = tpu.strided_load %arg14[%c5_35, %c0_36] {strides = array<i32: 16, 1>} : memref<32x128xf32, #tpu.memory_space<vmem>>, vector<2x128xf32>
    %43 = arith.maximumf %41, %42 : vector<2x128xf32>
    %c6 = arith.constant 6 : index
    %c0_37 = arith.constant 0 : index
    %44 = tpu.strided_load %arg14[%c6, %c0_37] {strides = array<i32: 16, 1>} : memref<32x128xf32, #tpu.memory_space<vmem>>, vector<2x128xf32>
    %c7 = arith.constant 7 : index
    %c0_38 = arith.constant 0 : index
    %45 = tpu.strided_load %arg14[%c7, %c0_38] {strides = array<i32: 16, 1>} : memref<32x128xf32, #tpu.memory_space<vmem>>, vector<2x128xf32>
    %46 = arith.maximumf %44, %45 : vector<2x128xf32>
    %c8 = arith.constant 8 : index
    %c0_39 = arith.constant 0 : index
    %47 = tpu.strided_load %arg14[%c8, %c0_39] {strides = array<i32: 16, 1>} : memref<32x128xf32, #tpu.memory_space<vmem>>, vector<2x128xf32>
    %c9 = arith.constant 9 : index
    %c0_40 = arith.constant 0 : index
    %48 = tpu.strided_load %arg14[%c9, %c0_40] {strides = array<i32: 16, 1>} : memref<32x128xf32, #tpu.memory_space<vmem>>, vector<2x128xf32>
    %49 = arith.maximumf %47, %48 : vector<2x128xf32>
    %c10 = arith.constant 10 : index
    %c0_41 = arith.constant 0 : index
    %50 = tpu.strided_load %arg14[%c10, %c0_41] {strides = array<i32: 16, 1>} : memref<32x128xf32, #tpu.memory_space<vmem>>, vector<2x128xf32>
    %c11 = arith.constant 11 : index
    %c0_42 = arith.constant 0 : index
    %51 = tpu.strided_load %arg14[%c11, %c0_42] {strides = array<i32: 16, 1>} : memref<32x128xf32, #tpu.memory_space<vmem>>, vector<2x128xf32>
    %52 = arith.maximumf %50, %51 : vector<2x128xf32>
    %53 = tpu.concatenate %37, %40, %43, %46, %49, %52 in 1 : vector<2x128xf32>, vector<2x128xf32>, vector<2x128xf32>, vector<2x128xf32>, vector<2x128xf32>, vector<2x128xf32> -> vector<2x768xf32>
    %c0_43 = arith.constant 0 : index
    %c0_44 = arith.constant 0 : index
    %54 = vector.load %arg6[%c0_43, %c0_44] : memref<768x120xf32, #tpu.memory_space<vmem>>, vector<768x120xf32>
    %cst_45 = arith.constant dense<0.000000e+00> : vector<2x120xf32>
    %55 = tpu.matmul %53, %54, %cst_45 {dimension_numbers = #tpu.dot_dimension_numbers<[1], [0], [0], [1], [0, 0, 1, 1], [], []>} : vector<2x768xf32>, vector<768x120xf32>, vector<2x120xf32> -> vector<2x120xf32>
    %c0_46 = arith.constant 0 : index
    %c0_47 = arith.constant 0 : index
    %56 = vector.load %arg7[%c0_46, %c0_47] : memref<1x120xf32, #tpu.memory_space<vmem>>, vector<1x120xf32>
    %57 = vector.broadcast %56 : vector<1x120xf32> to vector<2x120xf32>
    %58 = arith.addf %55, %57 : vector<2x120xf32>
    %cst_48 = arith.constant 0.000000e+00 : f32
    %59 = vector.broadcast %cst_48 : f32 to vector<2x120xf32>
    %60 = arith.maximumf %58, %59 : vector<2x120xf32>
    %c0_49 = arith.constant 0 : index
    %c0_50 = arith.constant 0 : index
    %61 = vector.load %arg8[%c0_49, %c0_50] : memref<120x84xf32, #tpu.memory_space<vmem>>, vector<120x84xf32>
    %cst_51 = arith.constant dense<0.000000e+00> : vector<2x84xf32>
    %62 = tpu.matmul %60, %61, %cst_51 {dimension_numbers = #tpu.dot_dimension_numbers<[1], [0], [0], [1], [0, 0, 1, 1], [], []>} : vector<2x120xf32>, vector<120x84xf32>, vector<2x84xf32> -> vector<2x84xf32>
    %c0_52 = arith.constant 0 : index
    %c0_53 = arith.constant 0 : index
    %63 = vector.load %arg9[%c0_52, %c0_53] : memref<1x84xf32, #tpu.memory_space<vmem>>, vector<1x84xf32>
    %64 = vector.broadcast %63 : vector<1x84xf32> to vector<2x84xf32>
    %65 = arith.addf %62, %64 : vector<2x84xf32>
    %cst_54 = arith.constant 0.000000e+00 : f32
    %66 = vector.broadcast %cst_54 : f32 to vector<2x84xf32>
    %67 = arith.maximumf %65, %66 : vector<2x84xf32>
    %c0_55 = arith.constant 0 : index
    %c0_56 = arith.constant 0 : index
    %68 = vector.load %arg10[%c0_55, %c0_56] : memref<84x10xf32, #tpu.memory_space<vmem>>, vector<84x10xf32>
    %cst_57 = arith.constant dense<0.000000e+00> : vector<2x10xf32>
    %69 = tpu.matmul %67, %68, %cst_57 {dimension_numbers = #tpu.dot_dimension_numbers<[1], [0], [0], [1], [0, 0, 1, 1], [], []>} : vector<2x84xf32>, vector<84x10xf32>, vector<2x10xf32> -> vector<2x10xf32>
    %c0_58 = arith.constant 0 : index
    %c0_59 = arith.constant 0 : index
    %70 = vector.load %arg11[%c0_58, %c0_59] : memref<1x10xf32, #tpu.memory_space<vmem>>, vector<1x10xf32>
    %71 = vector.broadcast %70 : vector<1x10xf32> to vector<2x10xf32>
    %72 = arith.addf %69, %71 : vector<2x10xf32>
    %c0_60 = arith.constant 0 : index
    %c0_61 = arith.constant 0 : index
    %c0_62 = arith.constant 0 : index
    %73 = vector.load %arg12[%c0_60, %c0_61, %c0_62] : memref<1x2x10xf32, #tpu.memory_space<vmem>>, vector<1x2x10xf32>
    %74 = vector.shape_cast %73 : vector<1x2x10xf32> to vector<2x10xf32>
    %75 = vector.shape_cast %72 : vector<2x10xf32> to vector<1x2x10xf32>
    tpu.vector_store %arg12[%c0_60, %c0_61, %c0_62], %75 {strides = array<i32>} : memref<1x2x10xf32, #tpu.memory_space<vmem>>, vector<1x2x10xf32>,
    return
  }
  func.func @transform_0(%arg0: i32) -> (i32, i32) {
    %c0_i32 = arith.constant 0 : i32
    %c0_i32_0 = arith.constant 0 : i32
    return %arg0, %c0_i32 : i32, i32
  }
  func.func @transform_1(%arg0: i32) -> (i32, i32) {
    %c0_i32 = arith.constant 0 : i32
    %c0_i32_0 = arith.constant 0 : i32
    %c0_i32_1 = arith.constant 0 : i32
    return %c0_i32, %c0_i32_0 : i32, i32
  }
  func.func @transform_2(%arg0: i32) -> (i32, i32) {
    %c0_i32 = arith.constant 0 : i32
    %c0_i32_0 = arith.constant 0 : i32
    %c0_i32_1 = arith.constant 0 : i32
    return %c0_i32, %c0_i32_0 : i32, i32
  }
  func.func @transform_3(%arg0: i32) -> (i32, i32) {
    %c0_i32 = arith.constant 0 : i32
    %c0_i32_0 = arith.constant 0 : i32
    %c0_i32_1 = arith.constant 0 : i32
    return %c0_i32, %c0_i32_0 : i32, i32
  }
  func.func @transform_4(%arg0: i32) -> (i32, i32) {
    %c0_i32 = arith.constant 0 : i32
    %c0_i32_0 = arith.constant 0 : i32
    %c0_i32_1 = arith.constant 0 : i32
    return %c0_i32, %c0_i32_0 : i32, i32
  }
  func.func @transform_5(%arg0: i32) -> (i32, i32) {
    %c0_i32 = arith.constant 0 : i32
    %c0_i32_0 = arith.constant 0 : i32
    %c0_i32_1 = arith.constant 0 : i32
    return %c0_i32, %c0_i32_0 : i32, i32
  }
  func.func @transform_6(%arg0: i32) -> (i32, i32) {
    %c0_i32 = arith.constant 0 : i32
    %c0_i32_0 = arith.constant 0 : i32
    %c0_i32_1 = arith.constant 0 : i32
    return %c0_i32, %c0_i32_0 : i32, i32
  }
  func.func @transform_7(%arg0: i32) -> (i32, i32) {
    %c0_i32 = arith.constant 0 : i32
    %c0_i32_0 = arith.constant 0 : i32
    %c0_i32_1 = arith.constant 0 : i32
    return %c0_i32, %c0_i32_0 : i32, i32
  }
  func.func @transform_8(%arg0: i32) -> (i32, i32) {
    %c0_i32 = arith.constant 0 : i32
    %c0_i32_0 = arith.constant 0 : i32
    %c0_i32_1 = arith.constant 0 : i32
    return %c0_i32, %c0_i32_0 : i32, i32
  }
  func.func @transform_9(%arg0: i32) -> (i32, i32) {
    %c0_i32 = arith.constant 0 : i32
    %c0_i32_0 = arith.constant 0 : i32
    %c0_i32_1 = arith.constant 0 : i32
    return %c0_i32, %c0_i32_0 : i32, i32
  }
  func.func @transform_10(%arg0: i32) -> (i32, i32) {
    %c0_i32 = arith.constant 0 : i32
    %c0_i32_0 = arith.constant 0 : i32
    %c0_i32_1 = arith.constant 0 : i32
    return %c0_i32, %c0_i32_0 : i32, i32
  }
  func.func @transform_11(%arg0: i32) -> (i32, i32, i32) {
    %c0_i32 = arith.constant 0 : i32
    %c0_i32_0 = arith.constant 0 : i32
    %c0_i32_1 = arith.constant 0 : i32
    return %arg0, %c0_i32, %c0_i32_0 : i32, i32, i32
  }
}

</mosaic_0001>

<llo_original>
// kernel: net_forward.1
$region0: #{net_forward.1}
  #allocation0 [shape = 'u32[]', space=smem, size = 0x4, offset = 0x4, fixed_abs, tag = 'smem constant byte address 0x4 - core index']
  #allocation1 [shape = 'u32[144,128]{1,0:T(1,128)}', space=vmem, size = 0x12000, scoped, tag = 'internal scratch']
  #allocation2 [shape = 'f32[72,128]{1,0:T(8,128)}', space=vmem, size = 0x9000, scoped, tag = 'scratch operand']
  #allocation3 [shape = 'f32[32,128]{1,0:T(8,128)}', space=vmem, size = 0x4000, scoped, tag = 'scratch operand']
  %s0 = inlined_call_operand.vmem [shape: f32[64,96], index: 0, kind: input, shape index: {}]
  %s1 = inlined_call_operand.vmem [shape: f32[96,256], index: 1, kind: input, shape index: {}]
  %s2 = inlined_call_operand.vmem [shape: f32[1,256], index: 2, kind: input, shape index: {}]
  %s3 = inlined_call_operand.vmem [shape: f32[384,256], index: 3, kind: input, shape index: {}]
  %s4 = inlined_call_operand.vmem [shape: f32[1,256], index: 4, kind: input, shape index: {}]
  %s5 = inlined_call_operand.vmem [shape: f32[768,120], index: 5, kind: input, shape index: {}]
  %s6 = inlined_call_operand.vmem [shape: f32[1,120], index: 6, kind: input, shape index: {}]
  %s7 = inlined_call_operand.vmem [shape: f32[120,84], index: 7, kind: input, shape index: {}]
  %s8 = inlined_call_operand.vmem [shape: f32[1,84], index: 8, kind: input, shape index: {}]
  %s9 = inlined_call_operand.vmem [shape: f32[84,10], index: 9, kind: input, shape index: {}]
  %s10 = inlined_call_operand.vmem [shape: f32[1,10], index: 10, kind: input, shape index: {}]
  %s11 = inlined_call_operand.hbm [shape: f32[1,2,10], index: 11, kind: output, shape index: {}]
  %s12 = sld [smem:[#allocation0]]
  $region54: #{net_forward.1} parent=0
    _
  %s14 = ssub.s32 1, %s12
  %s15 = scalar_select 0, %s14, %s12
  $region1: #{net_forward.1} parent=0
    #allocation4 [shape = 'u8[1024]{0}', space=vmem, size = 0x400, scoped, tag = 'output window, operand 0, single buffered']
    #allocation5 [shape = 's32[1]{0}', space=sflag, size = 0x4, scoped, tag = 'scoped memory for net_forward.1']
    %16 = vsyncpa [#allocation5], 0
    // Predicated region
    $region2: #{net_forward.1} parent=1 // pred_check
      _
    $region3: #{net_forward.1} parent=1 // pred_check_branch
      %18 = sbr.rel (0) target = $region5
    $region4: #{net_forward.1} parent=1 // pred_region
      _
    $region5: #{net_forward.1} parent=1 // pred_fallthru
      _
    // Predicated region
    $region6: #{net_forward.1} parent=1 // pred_check
      _
    $region7: #{net_forward.1} parent=1 // pred_check_branch
      %20 = sbr.rel (0) target = $region9
    $region8: #{net_forward.1} parent=1 // pred_region
      _
    $region9: #{net_forward.1} parent=1 // pred_fallthru
      _
    // Predicated region
    $region10: #{net_forward.1} parent=1 // pred_check
      _
    $region11: #{net_forward.1} parent=1 // pred_check_branch
      %22 = sbr.rel (0) target = $region13
    $region12: #{net_forward.1} parent=1 // pred_region
      _
    $region13: #{net_forward.1} parent=1 // pred_fallthru
      _
    // Predicated region
    $region14: #{net_forward.1} parent=1 // pred_check
      _
    $region15: #{net_forward.1} parent=1 // pred_check_branch
      %24 = sbr.rel (0) target = $region17
    $region16: #{net_forward.1} parent=1 // pred_region
      _
    $region17: #{net_forward.1} parent=1 // pred_fallthru
      _
    // Predicated region
    $region18: #{net_forward.1} parent=1 // pred_check
      _
    $region19: #{net_forward.1} parent=1 // pred_check_branch
      %26 = sbr.rel (0) target = $region21
    $region20: #{net_forward.1} parent=1 // pred_region
      _
    $region21: #{net_forward.1} parent=1 // pred_fallthru
      _
    // Predicated region
    $region22: #{net_forward.1} parent=1 // pred_check
      _
    $region23: #{net_forward.1} parent=1 // pred_check_branch
      %28 = sbr.rel (0) target = $region25
    $region24: #{net_forward.1} parent=1 // pred_region
      _
    $region25: #{net_forward.1} parent=1 // pred_fallthru
      _
    // Predicated region
    $region26: #{net_forward.1} parent=1 // pred_check
      _
    $region27: #{net_forward.1} parent=1 // pred_check_branch
      %30 = sbr.rel (0) target = $region29
    $region28: #{net_forward.1} parent=1 // pred_region
      _
    $region29: #{net_forward.1} parent=1 // pred_fallthru
      _
    // Predicated region
    $region30: #{net_forward.1} parent=1 // pred_check
      _
    $region31: #{net_forward.1} parent=1 // pred_check_branch
      %32 = sbr.rel (0) target = $region33
    $region32: #{net_forward.1} parent=1 // pred_region
      _
    $region33: #{net_forward.1} parent=1 // pred_fallthru
      _
    // Predicated region
    $region34: #{net_forward.1} parent=1 // pred_check
      _
    $region35: #{net_forward.1} parent=1 // pred_check_branch
      %34 = sbr.rel (0) target = $region37
    $region36: #{net_forward.1} parent=1 // pred_region
      _
    $region37: #{net_forward.1} parent=1 // pred_fallthru
      _
    // Predicated region
    $region38: #{net_forward.1} parent=1 // pred_check
      _
    $region39: #{net_forward.1} parent=1 // pred_check_branch
      %36 = sbr.rel (0) target = $region41
    $region40: #{net_forward.1} parent=1 // pred_region
      _
    $region41: #{net_forward.1} parent=1 // pred_fallthru
      _
    // Predicated region
    $region42: #{net_forward.1} parent=1 // pred_check
      _
    $region43: #{net_forward.1} parent=1 // pred_check_branch
      %38 = sbr.rel (0) target = $region45
    $region44: #{net_forward.1} parent=1 // pred_region
      _
    $region45: #{net_forward.1} parent=1 // pred_fallthru
      _
    %v39 = vld [vmem:[%s0] sm:$0xff]
    %v40 = vld [vmem:[%s0 + $0x8] sm:$0xff]
    %v41 = vld [vmem:[%s0 + $0x10] sm:$0xff]
    %v42 = vld [vmem:[%s0 + $0x18] sm:$0xff]
    %v43 = vld [vmem:[%s0 + $0x20] sm:$0xff]
    %v44 = vld [vmem:[%s0 + $0x28] sm:$0xff]
    %v45 = vld [vmem:[%s0 + $0x30] sm:$0xff]
    %v46 = vld [vmem:[%s0 + $0x38] sm:$0xff]
    %v47 = vld [vmem:[%s1] sm:$0xff]
    %v48 = vld [vmem:[%s1 + $0x8] sm:$0xff]
    %v49 = vld [vmem:[%s1 + $0x10] sm:$0xff]
    %v50 = vld [vmem:[%s1 + $0x18] sm:$0xff]
    %v51 = vld [vmem:[%s1 + $0x20] sm:$0xff]
    %v52 = vld [vmem:[%s1 + $0x28] sm:$0xff]
    %v53 = vld [vmem:[%s1 + $0x30] sm:$0xff]
    %v54 = vld [vmem:[%s1 + $0x38] sm:$0xff]
    %v55 = vld [vmem:[%s1 + $0x40] sm:$0xff]
    %v56 = vld [vmem:[%s1 + $0x48] sm:$0xff]
    %v57 = vld [vmem:[%s1 + $0x50] sm:$0xff]
    %v58 = vld [vmem:[%s1 + $0x58] sm:$0xff]
    %v59 = vld [vmem:[%s1 + $0x60] sm:$0xff]
    %v60 = vld [vmem:[%s1 + $0x68] sm:$0xff]
    %v61 = vld [vmem:[%s1 + $0x70] sm:$0xff]
    %v62 = vld [vmem:[%s1 + $0x78] sm:$0xff]
    %v63 = vld [vmem:[%s1 + $0x80] sm:$0xff]
    %v64 = vld [vmem:[%s1 + $0x88] sm:$0xff]
    %v65 = vld [vmem:[%s1 + $0x90] sm:$0xff]
    %v66 = vld [vmem:[%s1 + $0x98] sm:$0xff]
    %v67 = vld [vmem:[%s1 + $0xa0] sm:$0xff]
    %v68 = vld [vmem:[%s1 + $0xa8] sm:$0xff]
    %v69 = vld [vmem:[%s1 + $0xb0] sm:$0xff]
    %v70 = vld [vmem:[%s1 + $0xb8] sm:$0xff]
    %v71 = vld [vmem:[%s2] sm:$0x3]
    %v73 = vlaneseq
    %v74 = vshrl.u32 %v73, 7
    %v75 = vsub.s32 0, %v74
    %v76 = vrot.slane %v71, %v75
    %v77 = vlaneseq
    %v78 = vshrl.u32 %v77, 7
    %v79 = vsub.s32 1, %v78
    %v80 = vrot.slane %v71, %v79
    %vm83 = vcmask 785408
    %v85 = vsel %vm83, %v39, 0
    %v88 = vsel %vm83, %v40, 0
    %v91 = vsel %vm83, %v41, 0
    %v94 = vsel %vm83, %v42, 0
    %v97 = vsel %vm83, %v43, 0
    %v100 = vsel %vm83, %v44, 0
    %v103 = vsel %vm83, %v45, 0
    %v106 = vsel %vm83, %v46, 0
    %108 = vmatprep.subr.mxu0 %v48
    %109 = vmatpush1.msra.mxu0 %v47
    %110 = vmatprep.subr.mxu0 %v50
    %111 = vmatpush1.msra.mxu0 %v49
    %112 = vmatprep.subr.mxu0 %v52
    %113 = vmatpush1.msra.mxu0 %v51
    %114 = vmatprep.subr.mxu0 %v54
    %115 = vmatpush1.msra.mxu0 %v53
    %116 = vmatprep.subr.mxu0 %v56
    %117 = vmatpush1.msra.mxu0 %v55
    %118 = vmatprep.subr.mxu0 %v58
    %119 = vmatpush1.msra.mxu0 %v57
    %120 = vmatprep.subr.mxu0 %v60
    %121 = vmatpush1.msra.mxu0 %v59
    %122 = vmatprep.subr.mxu0 %v62
    %123 = vmatpush1.msra.mxu0 %v61
    %124 = vmatprep.subr.mxu0 %v64
    %125 = vmatpush1.msra.mxu0 %v63
    %126 = vmatprep.subr.mxu0 %v66
    %127 = vmatpush1.msra.mxu0 %v65
    %128 = vmatprep.subr.mxu0 %v68
    %129 = vmatpush1.msra.mxu0 %v67
    %130 = vmatprep.subr.mxu0 %v70
    %131 = vmatpush1.msra.mxu0 %v69
    %132 = vmatprep.subr.mxu0 0.0
    %133 = vmatpush1.msra.mxu0 0.0
    %134 = vmatprep.subr.mxu0 0.0
    %135 = vmatpush1.msra.mxu0 0.0
    %136 = vmatprep.subr.mxu0 0.0
    %137 = vmatpush1.msra.mxu0 0.0
    %138 = vmatprep.subr.mxu0 0.0
    %139 = vmatpush1.msra.mxu0 0.0
    %140 = vmatprep.subr.mxu0 0.0
    %141 = vmatpush1.msra.mxu0 0.0
    %142 = vmatprep.subr.mxu0 0.0
    %143 = vmatpush1.msra.mxu0 0.0
    %144 = vmatprep.subr.mxu0 0.0
    %145 = vmatpush1.msra.mxu0 0.0
    %146 = vmatprep.subr.mxu0 0.0
    %147 = vmatpush1.msra.mxu0 0.0
    %148 = vmatprep.subr.mxu0 0.0
    %149 = vmatpush1.msra.mxu0 0.0
    %150 = vmatprep.subr.mxu0 0.0
    %151 = vmatpush1.msra.mxu0 0.0
    %152 = vmatprep.subr.mxu0 0.0
    %153 = vmatpush1.msra.mxu0 0.0
    %154 = vmatprep.subr.mxu0 0.0
    %155 = vmatpush1.msra.mxu0 0.0
    %156 = vmatprep.subr.mxu0 0.0
    %157 = vmatpush1.msra.mxu0 0.0
    %158 = vmatprep.subr.mxu0 0.0
    %159 = vmatpush1.msra.mxu0 0.0
    %160 = vmatprep.subr.mxu0 0.0
    %161 = vmatpush1.msra.mxu0 0.0
    %162 = vmatprep.subr.mxu0 0.0
    %163 = vmatpush1.msra.mxu0 0.0
    %164 = vmatprep.subr.mxu0 0.0
    %165 = vmatpush1.msra.mxu0 0.0
    %166 = vmatprep.subr.mxu0 0.0
    %167 = vmatpush1.msra.mxu0 0.0
    %168 = vmatprep.subr.mxu0 0.0
    %169 = vmatpush1.msra.mxu0 0.0
    %170 = vmatprep.subr.mxu0 0.0
    %171 = vmatpush1.msra.mxu0 0.0
    %172 = vmatprep.mubr.f32.mxu0 0.0
    %173 = vmatmul.mubr.f32.gmra.mrb[0].mxu0 %v85
    %v174 = vpop.f32.mrb[0].mxu0
    %v175 = vadd.f32 %v76, %v174
    %v176 = vpop.f32.mrb[0].mxu0
    %v177 = vadd.f32 %v80, %v176
    %178 = vmatprep.mubr.f32.mxu0 0.0
    %179 = vmatmul.mubr.f32.gmra.mrb[0].mxu0 %v88
    %v180 = vpop.f32.mrb[0].mxu0
    %v181 = vadd.f32 %v76, %v180
    %v182 = vpop.f32.mrb[0].mxu0
    %v183 = vadd.f32 %v80, %v182
    %184 = vmatprep.mubr.f32.mxu0 0.0
    %185 = vmatmul.mubr.f32.gmra.mrb[0].mxu0 %v91
    %v186 = vpop.f32.mrb[0].mxu0
    %v187 = vadd.f32 %v76, %v186
    %v188 = vpop.f32.mrb[0].mxu0
    %v189 = vadd.f32 %v80, %v188
    %190 = vmatprep.mubr.f32.mxu0 0.0
    %191 = vmatmul.mubr.f32.gmra.mrb[0].mxu0 %v94
    %v192 = vpop.f32.mrb[0].mxu0
    %v193 = vadd.f32 %v76, %v192
    %v194 = vpop.f32.mrb[0].mxu0
    %v195 = vadd.f32 %v80, %v194
    %196 = vmatprep.mubr.f32.mxu0 0.0
    %197 = vmatmul.mubr.f32.gmra.mrb[0].mxu0 %v97
    %v198 = vpop.f32.mrb[0].mxu0
    %v199 = vadd.f32 %v76, %v198
    %v200 = vpop.f32.mrb[0].mxu0
    %v201 = vadd.f32 %v80, %v200
    %202 = vmatprep.mubr.f32.mxu0 0.0
    %203 = vmatmul.mubr.f32.gmra.mrb[0].mxu0 %v100
    %v204 = vpop.f32.mrb[0].mxu0
    %v205 = vadd.f32 %v76, %v204
    %v206 = vpop.f32.mrb[0].mxu0
    %v207 = vadd.f32 %v80, %v206
    %208 = vmatprep.mubr.f32.mxu0 0.0
    %209 = vmatmul.mubr.f32.gmra.mrb[0].mxu0 %v103
    %v210 = vpop.f32.mrb[0].mxu0
    %v211 = vadd.f32 %v76, %v210
    %v212 = vpop.f32.mrb[0].mxu0
    %v213 = vadd.f32 %v80, %v212
    %214 = vmatprep.mubr.f32.mxu0 0.0
    %215 = vmatmul.mubr.f32.gmra.mrb[0].mxu0 %v106
    %v216 = vpop.f32.mrb[0].mxu0
    %v217 = vadd.f32 %v76, %v216
    %v218 = vpop.f32.mrb[0].mxu0
    %v219 = vadd.f32 %v80, %v218
    %220 = vdwg.mxu0
    %v221 = vmax.f32 %v175, 0.0
    %v222 = vmax.f32 %v177, 0.0
    %v223 = vmax.f32 %v181, 0.0
    %v224 = vmax.f32 %v183, 0.0
    %v225 = vmax.f32 %v187, 0.0
    %v226 = vmax.f32 %v189, 0.0
    %v227 = vmax.f32 %v193, 0.0
    %v228 = vmax.f32 %v195, 0.0
    %v229 = vmax.f32 %v199, 0.0
    %v230 = vmax.f32 %v201, 0.0
    %v231 = vmax.f32 %v205, 0.0
    %v232 = vmax.f32 %v207, 0.0
    %v233 = vmax.f32 %v211, 0.0
    %v234 = vmax.f32 %v213, 0.0
    %v235 = vmax.f32 %v217, 0.0
    %v236 = vmax.f32 %v219, 0.0
    %v237 = vmax.f32 %v221, %v222
    %v238 = vmax.f32 %v223, %v224
    %v239 = vmax.f32 %v225, %v226
    %v240 = vmax.f32 %v227, %v228
    %v241 = vmax.f32 %v229, %v230
    %v242 = vmax.f32 %v231, %v232
    %v243 = vmax.f32 %v233, %v234
    %v244 = vmax.f32 %v235, %v236
    %245 = vst [vmem:[#allocation2] sm:$0xff] %v237
    %246 = vst [vmem:[#allocation2 + $0x8] sm:$0xff] %v238
    %247 = vst [vmem:[#allocation2 + $0x10] sm:$0xff] %v239
    %248 = vst [vmem:[#allocation2 + $0x18] sm:$0xff] %v240
    %249 = vst [vmem:[#allocation2 + $0x20] sm:$0xff] %v241
    %250 = vst [vmem:[#allocation2 + $0x28] sm:$0xff] %v242
    %251 = vst [vmem:[#allocation2 + $0x30] sm:$0xff] %v243
    %252 = vst [vmem:[#allocation2 + $0x38] sm:$0xff] %v244
    %253 = vst [vmem:[#allocation2 + $0x40] sm:$0xff] 0.0
    %v254 = vld [vmem:[#allocation2] ss:$2 sm:$0xff]
    %s255 = scalar_lea.vmem [#allocation2], 16
    %v256 = vld [vmem:[%s255] ss:$2 sm:$0xff]
    %s257 = scalar_lea.vmem [#allocation2], 32
    %v258 = vld [vmem:[%s257] ss:$2 sm:$0xff]
    %s259 = scalar_lea.vmem [#allocation2], 48
    %v260 = vld [vmem:[%s259] ss:$2 sm:$0xff]
    %s261 = scalar_lea.vmem [#allocation2], 1
    %v262 = vld [vmem:[%s261] ss:$2 sm:$0xff]
    %s263 = scalar_lea.vmem [#allocation2], 17
    %v264 = vld [vmem:[%s263] ss:$2 sm:$0xff]
    %s265 = scalar_lea.vmem [#allocation2], 33
    %v266 = vld [vmem:[%s265] ss:$2 sm:$0xff]
    %s267 = scalar_lea.vmem [#allocation2], 49
    %v268 = vld [vmem:[%s267] ss:$2 sm:$0xff]
    %v269 = vmax.f32 %v254, %v262
    %v270 = vmax.f32 %v256, %v264
    %v271 = vmax.f32 %v258, %v266
    %v272 = vmax.f32 %v260, %v268
    %s273 = scalar_lea.vmem [#allocation2], 2
    %v274 = vld [vmem:[%s273] ss:$2 sm:$0xff]
    %s275 = scalar_lea.vmem [#allocation2], 18
    %v276 = vld [vmem:[%s275] ss:$2 sm:$0xff]
    %s277 = scalar_lea.vmem [#allocation2], 34
    %v278 = vld [vmem:[%s277] ss:$2 sm:$0xff]
    %s279 = scalar_lea.vmem [#allocation2], 50
    %v280 = vld [vmem:[%s279] ss:$2 sm:$0xff]
    %s281 = scalar_lea.vmem [#allocation2], 3
    %v282 = vld [vmem:[%s281] ss:$2 sm:$0xff]
    %s283 = scalar_lea.vmem [#allocation2], 19
    %v284 = vld [vmem:[%s283] ss:$2 sm:$0xff]
    %s285 = scalar_lea.vmem [#allocation2], 35
    %v286 = vld [vmem:[%s285] ss:$2 sm:$0xff]
    %s287 = scalar_lea.vmem [#allocation2], 51
    %v288 = vld [vmem:[%s287] ss:$2 sm:$0xff]
    %v289 = vmax.f32 %v274, %v282
    %v290 = vmax.f32 %v276, %v284
    %v291 = vmax.f32 %v278, %v286
    %v292 = vmax.f32 %v280, %v288
    %s293 = scalar_lea.vmem [#allocation2], 4
    %v294 = vld [vmem:[%s293] ss:$2 sm:$0xff]
    %s295 = scalar_lea.vmem [#allocation2], 20
    %v296 = vld [vmem:[%s295] ss:$2 sm:$0xff]
    %s297 = scalar_lea.vmem [#allocation2], 36
    %v298 = vld [vmem:[%s297] ss:$2 sm:$0xff]
    %s299 = scalar_lea.vmem [#allocation2], 52
    %v300 = vld [vmem:[%s299] ss:$2 sm:$0xff]
    %s301 = scalar_lea.vmem [#allocation2], 5
    %v302 = vld [vmem:[%s301] ss:$2 sm:$0xff]
    %s303 = scalar_lea.vmem [#allocation2], 21
    %v304 = vld [vmem:[%s303] ss:$2 sm:$0xff]
    %s305 = scalar_lea.vmem [#allocation2], 37
    %v306 = vld [vmem:[%s305] ss:$2 sm:$0xff]
    %s307 = scalar_lea.vmem [#allocation2], 53
    %v308 = vld [vmem:[%s307] ss:$2 sm:$0xff]
    %v309 = vmax.f32 %v294, %v302
    %v310 = vmax.f32 %v296, %v304
    %v311 = vmax.f32 %v298, %v306
    %v312 = vmax.f32 %v300, %v308
    %v313 = vld [vmem:[%s3] sm:$0xff]
    %v314 = vld [vmem:[%s3 + $0x8] sm:$0xff]
    %v315 = vld [vmem:[%s3 + $0x10] sm:$0xff]
    %v316 = vld [vmem:[%s3 + $0x18] sm:$0xff]
    %v317 = vld [vmem:[%s3 + $0x20] sm:$0xff]
    %v318 = vld [vmem:[%s3 + $0x28] sm:$0xff]
    %v319 = vld [vmem:[%s3 + $0x30] sm:$0xff]
    %v320 = vld [vmem:[%s3 + $0x38] sm:$0xff]
    %v321 = vld [vmem:[%s3 + $0x40] sm:$0xff]
    %v322 = vld [vmem:[%s3 + $0x48] sm:$0xff]
    %v323 = vld [vmem:[%s3 + $0x50] sm:$0xff]
    %v324 = vld [vmem:[%s3 + $0x58] sm:$0xff]
    %v325 = vld [vmem:[%s3 + $0x60] sm:$0xff]
    %v326 = vld [vmem:[%s3 + $0x68] sm:$0xff]
    %v327 = vld [vmem:[%s3 + $0x70] sm:$0xff]
    %v328 = vld [vmem:[%s3 + $0x78] sm:$0xff]
    %v329 = vld [vmem:[%s3 + $0x80] sm:$0xff]
    %v330 = vld [vmem:[%s3 + $0x88] sm:$0xff]
    %v331 = vld [vmem:[%s3 + $0x90] sm:$0xff]
    %v332 = vld [vmem:[%s3 + $0x98] sm:$0xff]
    %v333 = vld [vmem:[%s3 + $0xa0] sm:$0xff]
    %v334 = vld [vmem:[%s3 + $0xa8] sm:$0xff]
    %v335 = vld [vmem:[%s3 + $0xb0] sm:$0xff]
    %v336 = vld [vmem:[%s3 + $0xb8] sm:$0xff]
    %v337 = vld [vmem:[%s3 + $0xc0] sm:$0xff]
    %v338 = vld [vmem:[%s3 + $0xc8] sm:$0xff]
    %v339 = vld [vmem:[%s3 + $0xd0] sm:$0xff]
    %v340 = vld [vmem:[%s3 + $0xd8] sm:$0xff]
    %v341 = vld [vmem:[%s3 + $0xe0] sm:$0xff]
    %v342 = vld [vmem:[%s3 + $0xe8] sm:$0xff]
    %v343 = vld [vmem:[%s3 + $0xf0] sm:$0xff]
    %v344 = vld [vmem:[%s3 + $0xf8] sm:$0xff]
    %v345 = vld [vmem:[%s3 + $0x100] sm:$0xff]
    %v346 = vld [vmem:[%s3 + $0x108] sm:$0xff]
    %v347 = vld [vmem:[%s3 + $0x110] sm:$0xff]
    %v348 = vld [vmem:[%s3 + $0x118] sm:$0xff]
    %v349 = vld [vmem:[%s3 + $0x120] sm:$0xff]
    %v350 = vld [vmem:[%s3 + $0x128] sm:$0xff]
    %v351 = vld [vmem:[%s3 + $0x130] sm:$0xff]
    %v352 = vld [vmem:[%s3 + $0x138] sm:$0xff]
    %v353 = vld [vmem:[%s3 + $0x140] sm:$0xff]
    %v354 = vld [vmem:[%s3 + $0x148] sm:$0xff]
    %v355 = vld [vmem:[%s3 + $0x150] sm:$0xff]
    %v356 = vld [vmem:[%s3 + $0x158] sm:$0xff]
    %v357 = vld [vmem:[%s3 + $0x160] sm:$0xff]
    %v358 = vld [vmem:[%s3 + $0x168] sm:$0xff]
    %v359 = vld [vmem:[%s3 + $0x170] sm:$0xff]
    %v360 = vld [vmem:[%s3 + $0x178] sm:$0xff]
    %v361 = vld [vmem:[%s3 + $0x180] sm:$0xff]
    %v362 = vld [vmem:[%s3 + $0x188] sm:$0xff]
    %v363 = vld [vmem:[%s3 + $0x190] sm:$0xff]
    %v364 = vld [vmem:[%s3 + $0x198] sm:$0xff]
    %v365 = vld [vmem:[%s3 + $0x1a0] sm:$0xff]
    %v366 = vld [vmem:[%s3 + $0x1a8] sm:$0xff]
    %v367 = vld [vmem:[%s3 + $0x1b0] sm:$0xff]
    %v368 = vld [vmem:[%s3 + $0x1b8] sm:$0xff]
    %v369 = vld [vmem:[%s3 + $0x1c0] sm:$0xff]
    %v370 = vld [vmem:[%s3 + $0x1c8] sm:$0xff]
    %v371 = vld [vmem:[%s3 + $0x1d0] sm:$0xff]
    %v372 = vld [vmem:[%s3 + $0x1d8] sm:$0xff]
    %v373 = vld [vmem:[%s3 + $0x1e0] sm:$0xff]
    %v374 = vld [vmem:[%s3 + $0x1e8] sm:$0xff]
    %v375 = vld [vmem:[%s3 + $0x1f0] sm:$0xff]
    %v376 = vld [vmem:[%s3 + $0x1f8] sm:$0xff]
    %v377 = vld [vmem:[%s3 + $0x200] sm:$0xff]
    %v378 = vld [vmem:[%s3 + $0x208] sm:$0xff]
    %v379 = vld [vmem:[%s3 + $0x210] sm:$0xff]
    %v380 = vld [vmem:[%s3 + $0x218] sm:$0xff]
    %v381 = vld [vmem:[%s3 + $0x220] sm:$0xff]
    %v382 = vld [vmem:[%s3 + $0x228] sm:$0xff]
    %v383 = vld [vmem:[%s3 + $0x230] sm:$0xff]
    %v384 = vld [vmem:[%s3 + $0x238] sm:$0xff]
    %v385 = vld [vmem:[%s3 + $0x240] sm:$0xff]
    %v386 = vld [vmem:[%s3 + $0x248] sm:$0xff]
    %v387 = vld [vmem:[%s3 + $0x250] sm:$0xff]
    %v388 = vld [vmem:[%s3 + $0x258] sm:$0xff]
    %v389 = vld [vmem:[%s3 + $0x260] sm:$0xff]
    %v390 = vld [vmem:[%s3 + $0x268] sm:$0xff]
    %v391 = vld [vmem:[%s3 + $0x270] sm:$0xff]
    %v392 = vld [vmem:[%s3 + $0x278] sm:$0xff]
    %v393 = vld [vmem:[%s3 + $0x280] sm:$0xff]
    %v394 = vld [vmem:[%s3 + $0x288] sm:$0xff]
    %v395 = vld [vmem:[%s3 + $0x290] sm:$0xff]
    %v396 = vld [vmem:[%s3 + $0x298] sm:$0xff]
    %v397 = vld [vmem:[%s3 + $0x2a0] sm:$0xff]
    %v398 = vld [vmem:[%s3 + $0x2a8] sm:$0xff]
    %v399 = vld [vmem:[%s3 + $0x2b0] sm:$0xff]
    %v400 = vld [vmem:[%s3 + $0x2b8] sm:$0xff]
    %v401 = vld [vmem:[%s3 + $0x2c0] sm:$0xff]
    %v402 = vld [vmem:[%s3 + $0x2c8] sm:$0xff]
    %v403 = vld [vmem:[%s3 + $0x2d0] sm:$0xff]
    %v404 = vld [vmem:[%s3 + $0x2d8] sm:$0xff]
    %v405 = vld [vmem:[%s3 + $0x2e0] sm:$0xff]
    %v406 = vld [vmem:[%s3 + $0x2e8] sm:$0xff]
    %v407 = vld [vmem:[%s3 + $0x2f0] sm:$0xff]
    %v408 = vld [vmem:[%s3 + $0x2f8] sm:$0xff]
    %v409 = vld [vmem:[%s4] sm:$0x3]
    %v411 = vlaneseq
    %v412 = vshrl.u32 %v411, 7
    %v413 = vsub.s32 0, %v412
    %v414 = vrot.slane %v409, %v413
    %v415 = vlaneseq
    %v416 = vshrl.u32 %v415, 7
    %v417 = vsub.s32 1, %v416
    %v418 = vrot.slane %v409, %v417
    %421 = vmatprep.subr.mxu0 %v314
    %422 = vmatpush1.msra.mxu0 %v313
    %423 = vmatprep.subr.mxu0 %v316
    %424 = vmatpush1.msra.mxu0 %v315
    %425 = vmatprep.subr.mxu0 %v318
    %426 = vmatpush1.msra.mxu0 %v317
    %427 = vmatprep.subr.mxu0 %v320
    %428 = vmatpush1.msra.mxu0 %v319
    %429 = vmatprep.subr.mxu0 %v322
    %430 = vmatpush1.msra.mxu0 %v321
    %431 = vmatprep.subr.mxu0 %v324
    %432 = vmatpush1.msra.mxu0 %v323
    %433 = vmatprep.subr.mxu0 %v326
    %434 = vmatpush1.msra.mxu0 %v325
    %435 = vmatprep.subr.mxu0 %v328
    %436 = vmatpush1.msra.mxu0 %v327
    %437 = vmatprep.subr.mxu0 %v330
    %438 = vmatpush1.msra.mxu0 %v329
    %439 = vmatprep.subr.mxu0 %v332
    %440 = vmatpush1.msra.mxu0 %v331
    %441 = vmatprep.subr.mxu0 %v334
    %442 = vmatpush1.msra.mxu0 %v333
    %443 = vmatprep.subr.mxu0 %v336
    %444 = vmatpush1.msra.mxu0 %v335
    %445 = vmatprep.subr.mxu0 %v338
    %446 = vmatpush1.msra.mxu0 %v337
    %447 = vmatprep.subr.mxu0 %v340
    %448 = vmatpush1.msra.mxu0 %v339
    %449 = vmatprep.subr.mxu0 %v342
    %450 = vmatpush1.msra.mxu0 %v341
    %451 = vmatprep.subr.mxu0 %v344
    %452 = vmatpush1.msra.mxu0 %v343
    %453 = vmatprep.subr.mxu0 %v346
    %454 = vmatpush1.msra.mxu0 %v345
    %455 = vmatprep.subr.mxu0 %v348
    %456 = vmatpush1.msra.mxu0 %v347
    %457 = vmatprep.subr.mxu0 %v350
    %458 = vmatpush1.msra.mxu0 %v349
    %459 = vmatprep.subr.mxu0 %v352
    %460 = vmatpush1.msra.mxu0 %v351
    %461 = vmatprep.subr.mxu0 %v354
    %462 = vmatpush1.msra.mxu0 %v353
    %463 = vmatprep.subr.mxu0 %v356
    %464 = vmatpush1.msra.mxu0 %v355
    %465 = vmatprep.subr.mxu0 %v358
    %466 = vmatpush1.msra.mxu0 %v357
    %467 = vmatprep.subr.mxu0 %v360
    %468 = vmatpush1.msra.mxu0 %v359
    %469 = vmatprep.subr.mxu0 %v362
    %470 = vmatpush1.msra.mxu0 %v361
    %471 = vmatprep.subr.mxu0 %v364
    %472 = vmatpush1.msra.mxu0 %v363
    %473 = vmatprep.subr.mxu0 %v366
    %474 = vmatpush1.msra.mxu0 %v365
    %475 = vmatprep.subr.mxu0 %v368
    %476 = vmatpush1.msra.mxu0 %v367
    %477 = vmatprep.subr.mxu0 %v370
    %478 = vmatpush1.msra.mxu0 %v369
    %479 = vmatprep.subr.mxu0 %v372
    %480 = vmatpush1.msra.mxu0 %v371
    %481 = vmatprep.subr.mxu0 %v374
    %482 = vmatpush1.msra.mxu0 %v373
    %483 = vmatprep.subr.mxu0 %v376
    %484 = vmatpush1.msra.mxu0 %v375
    %485 = vmatprep.mubr.f32.mxu0 %v289
    %486 = vmatmul.mubr.f32.gmra.mrb[0].mxu0 %v269
    %v487 = vpop.f32.mrb[0].mxu0
    %v488 = vadd.f32 %v414, %v487
    %v489 = vpop.f32.mrb[0].mxu0
    %v490 = vadd.f32 %v418, %v489
    %491 = vmatprep.mubr.f32.mxu0 %v290
    %492 = vmatmul.mubr.f32.gmra.mrb[0].mxu0 %v270
    %v493 = vpop.f32.mrb[0].mxu0
    %v494 = vadd.f32 %v414, %v493
    %v495 = vpop.f32.mrb[0].mxu0
    %v496 = vadd.f32 %v418, %v495
    %497 = vmatprep.mubr.f32.mxu0 %v291
    %498 = vmatmul.mubr.f32.gmra.mrb[0].mxu0 %v271
    %v499 = vpop.f32.mrb[0].mxu0
    %v500 = vadd.f32 %v414, %v499
    %v501 = vpop.f32.mrb[0].mxu0
    %v502 = vadd.f32 %v418, %v501
    %503 = vmatprep.mubr.f32.mxu0 %v292
    %504 = vmatmul.mubr.f32.gmra.mrb[0].mxu0 %v272
    %v505 = vpop.f32.mrb[0].mxu0
    %v506 = vadd.f32 %v414, %v505
    %v507 = vpop.f32.mrb[0].mxu0
    %v508 = vadd.f32 %v418, %v507
    %509 = vdwg.mxu0
    %510 = vmatprep.subr.mxu0 %v378
    %511 = vmatpush1.msra.mxu0 %v377
    %512 = vmatprep.subr.mxu0 %v380
    %513 = vmatpush1.msra.mxu0 %v379
    %514 = vmatprep.subr.mxu0 %v382
    %515 = vmatpush1.msra.mxu0 %v381
    %516 = vmatprep.subr.mxu0 %v384
    %517 = vmatpush1.msra.mxu0 %v383
    %518 = vmatprep.subr.mxu0 %v386
    %519 = vmatpush1.msra.mxu0 %v385
    %520 = vmatprep.subr.mxu0 %v388
    %521 = vmatpush1.msra.mxu0 %v387
    %522 = vmatprep.subr.mxu0 %v390
    %523 = vmatpush1.msra.mxu0 %v389
    %524 = vmatprep.subr.mxu0 %v392
    %525 = vmatpush1.msra.mxu0 %v391
    %526 = vmatprep.subr.mxu0 %v394
    %527 = vmatpush1.msra.mxu0 %v393
    %528 = vmatprep.subr.mxu0 %v396
    %529 = vmatpush1.msra.mxu0 %v395
    %530 = vmatprep.subr.mxu0 %v398
    %531 = vmatpush1.msra.mxu0 %v397
    %532 = vmatprep.subr.mxu0 %v400
    %533 = vmatpush1.msra.mxu0 %v399
    %534 = vmatprep.subr.mxu0 %v402
    %535 = vmatpush1.msra.mxu0 %v401
    %536 = vmatprep.subr.mxu0 %v404
    %537 = vmatpush1.msra.mxu0 %v403
    %538 = vmatprep.subr.mxu0 %v406
    %539 = vmatpush1.msra.mxu0 %v405
    %540 = vmatprep.subr.mxu0 %v408
    %541 = vmatpush1.msra.mxu0 %v407
    %542 = vmatprep.subr.mxu0 0.0
    %543 = vmatpush1.msra.mxu0 0.0
    %544 = vmatprep.subr.mxu0 0.0
    %545 = vmatpush1.msra.mxu0 0.0
    %546 = vmatprep.subr.mxu0 0.0
    %547 = vmatpush1.msra.mxu0 0.0
    %548 = vmatprep.subr.mxu0 0.0
    %549 = vmatpush1.msra.mxu0 0.0
    %550 = vmatprep.subr.mxu0 0.0
    %551 = vmatpush1.msra.mxu0 0.0
    %552 = vmatprep.subr.mxu0 0.0
    %553 = vmatpush1.msra.mxu0 0.0
    %554 = vmatprep.subr.mxu0 0.0
    %555 = vmatpush1.msra.mxu0 0.0
    %556 = vmatprep.subr.mxu0 0.0
    %557 = vmatpush1.msra.mxu0 0.0
    %558 = vmatprep.subr.mxu0 0.0
    %559 = vmatpush1.msra.mxu0 0.0
    %560 = vmatprep.subr.mxu0 0.0
    %561 = vmatpush1.msra.mxu0 0.0
    %562 = vmatprep.subr.mxu0 0.0
    %563 = vmatpush1.msra.mxu0 0.0
    %564 = vmatprep.subr.mxu0 0.0
    %565 = vmatpush1.msra.mxu0 0.0
    %566 = vmatprep.subr.mxu0 0.0
    %567 = vmatpush1.msra.mxu0 0.0
    %568 = vmatprep.subr.mxu0 0.0
    %569 = vmatpush1.msra.mxu0 0.0
    %570 = vmatprep.subr.mxu0 0.0
    %571 = vmatpush1.msra.mxu0 0.0
    %572 = vmatprep.subr.mxu0 0.0
    %573 = vmatpush1.msra.mxu0 0.0
    %574 = vmatprep.mubr.f32.mxu0 0.0
    %575 = vmatmul.mubr.f32.gmra.mrb[0].mxu0 %v309
    %v576 = vpop.f32.mrb[0].mxu0
    %v577 = vadd.f32 %v488, %v576
    %v578 = vpop.f32.mrb[0].mxu0
    %v579 = vadd.f32 %v490, %v578
    %580 = vmatprep.mubr.f32.mxu0 0.0
    %581 = vmatmul.mubr.f32.gmra.mrb[0].mxu0 %v310
    %v582 = vpop.f32.mrb[0].mxu0
    %v583 = vadd.f32 %v494, %v582
    %v584 = vpop.f32.mrb[0].mxu0
    %v585 = vadd.f32 %v496, %v584
    %586 = vmatprep.mubr.f32.mxu0 0.0
    %587 = vmatmul.mubr.f32.gmra.mrb[0].mxu0 %v311
    %v588 = vpop.f32.mrb[0].mxu0
    %v589 = vadd.f32 %v500, %v588
    %v590 = vpop.f32.mrb[0].mxu0
    %v591 = vadd.f32 %v502, %v590
    %592 = vmatprep.mubr.f32.mxu0 0.0
    %593 = vmatmul.mubr.f32.gmra.mrb[0].mxu0 %v312
    %v594 = vpop.f32.mrb[0].mxu0
    %v595 = vadd.f32 %v506, %v594
    %v596 = vpop.f32.mrb[0].mxu0
    %v597 = vadd.f32 %v508, %v596
    %598 = vdwg.mxu0
    %v599 = vmax.f32 %v577, 0.0
    %v600 = vmax.f32 %v579, 0.0
    %v601 = vmax.f32 %v583, 0.0
    %v602 = vmax.f32 %v585, 0.0
    %v603 = vmax.f32 %v589, 0.0
    %v604 = vmax.f32 %v591, 0.0
    %v605 = vmax.f32 %v595, 0.0
    %v606 = vmax.f32 %v597, 0.0
    %v607 = vmax.f32 %v599, %v600
    %v608 = vmax.f32 %v601, %v602
    %v609 = vmax.f32 %v603, %v604
    %v610 = vmax.f32 %v605, %v606
    %611 = vst [vmem:[#allocation3] sm:$0xff] %v607
    %612 = vst [vmem:[#allocation3 + $0x8] sm:$0xff] %v608
    %613 = vst [vmem:[#allocation3 + $0x10] sm:$0xff] %v609
    %614 = vst [vmem:[#allocation3 + $0x18] sm:$0xff] %v610
    %v615 = vld [vmem:[#allocation3] ss:$16 sm:$0x3]
    %s616 = scalar_lea.vmem [#allocation3], 1
    %v617 = vld [vmem:[%s616] ss:$16 sm:$0x3]
    %v618 = vmax.f32 %v615, %v617
    %s619 = scalar_lea.vmem [#allocation3], 2
    %v620 = vld [vmem:[%s619] ss:$16 sm:$0x3]
    %s621 = scalar_lea.vmem [#allocation3], 3
    %v622 = vld [vmem:[%s621] ss:$16 sm:$0x3]
    %v623 = vmax.f32 %v620, %v622
    %s624 = scalar_lea.vmem [#allocation3], 4
    %v625 = vld [vmem:[%s624] ss:$16 sm:$0x3]
    %s626 = scalar_lea.vmem [#allocation3], 5
    %v627 = vld [vmem:[%s626] ss:$16 sm:$0x3]
    %v628 = vmax.f32 %v625, %v627
    %s629 = scalar_lea.vmem [#allocation3], 6
    %v630 = vld [vmem:[%s629] ss:$16 sm:$0x3]
    %s631 = scalar_lea.vmem [#allocation3], 7
    %v632 = vld [vmem:[%s631] ss:$16 sm:$0x3]
    %v633 = vmax.f32 %v630, %v632
    %s634 = scalar_lea.vmem [#allocation3], 8
    %v635 = vld [vmem:[%s634] ss:$16 sm:$0x3]
    %s636 = scalar_lea.vmem [#allocation3], 9
    %v637 = vld [vmem:[%s636] ss:$16 sm:$0x3]
    %v638 = vmax.f32 %v635, %v637
    %s639 = scalar_lea.vmem [#allocation3], 10
    %v640 = vld [vmem:[%s639] ss:$16 sm:$0x3]
    %s641 = scalar_lea.vmem [#allocation3], 11
    %v642 = vld [vmem:[%s641] ss:$16 sm:$0x3]
    %v643 = vmax.f32 %v640, %v642
    %v644 = vld [vmem:[%s5] sm:$0xff]
    %v645 = vld [vmem:[%s5 + $0x8] sm:$0xff]
    %v646 = vld [vmem:[%s5 + $0x10] sm:$0xff]
    %v647 = vld [vmem:[%s5 + $0x18] sm:$0xff]
    %v648 = vld [vmem:[%s5 + $0x20] sm:$0xff]
    %v649 = vld [vmem:[%s5 + $0x28] sm:$0xff]
    %v650 = vld [vmem:[%s5 + $0x30] sm:$0xff]
    %v651 = vld [vmem:[%s5 + $0x38] sm:$0xff]
    %v652 = vld [vmem:[%s5 + $0x40] sm:$0xff]
    %v653 = vld [vmem:[%s5 + $0x48] sm:$0xff]
    %v654 = vld [vmem:[%s5 + $0x50] sm:$0xff]
    %v655 = vld [vmem:[%s5 + $0x58] sm:$0xff]
    %v656 = vld [vmem:[%s5 + $0x60] sm:$0xff]
    %v657 = vld [vmem:[%s5 + $0x68] sm:$0xff]
    %v658 = vld [vmem:[%s5 + $0x70] sm:$0xff]
    %v659 = vld [vmem:[%s5 + $0x78] sm:$0xff]
    %v660 = vld [vmem:[%s5 + $0x80] sm:$0xff]
    %v661 = vld [vmem:[%s5 + $0x88] sm:$0xff]
    %v662 = vld [vmem:[%s5 + $0x90] sm:$0xff]
    %v663 = vld [vmem:[%s5 + $0x98] sm:$0xff]
    %v664 = vld [vmem:[%s5 + $0xa0] sm:$0xff]
    %v665 = vld [vmem:[%s5 + $0xa8] sm:$0xff]
    %v666 = vld [vmem:[%s5 + $0xb0] sm:$0xff]
    %v667 = vld [vmem:[%s5 + $0xb8] sm:$0xff]
    %v668 = vld [vmem:[%s5 + $0xc0] sm:$0xff]
    %v669 = vld [vmem:[%s5 + $0xc8] sm:$0xff]
    %v670 = vld [vmem:[%s5 + $0xd0] sm:$0xff]
    %v671 = vld [vmem:[%s5 + $0xd8] sm:$0xff]
    %v672 = vld [vmem:[%s5 + $0xe0] sm:$0xff]
    %v673 = vld [vmem:[%s5 + $0xe8] sm:$0xff]
    %v674 = vld [vmem:[%s5 + $0xf0] sm:$0xff]
    %v675 = vld [vmem:[%s5 + $0xf8] sm:$0xff]
    %v676 = vld [vmem:[%s5 + $0x100] sm:$0xff]
    %v677 = vld [vmem:[%s5 + $0x108] sm:$0xff]
    %v678 = vld [vmem:[%s5 + $0x110] sm:$0xff]
    %v679 = vld [vmem:[%s5 + $0x118] sm:$0xff]
    %v680 = vld [vmem:[%s5 + $0x120] sm:$0xff]
    %v681 = vld [vmem:[%s5 + $0x128] sm:$0xff]
    %v682 = vld [vmem:[%s5 + $0x130] sm:$0xff]
    %v683 = vld [vmem:[%s5 + $0x138] sm:$0xff]
    %v684 = vld [vmem:[%s5 + $0x140] sm:$0xff]
    %v685 = vld [vmem:[%s5 + $0x148] sm:$0xff]
    %v686 = vld [vmem:[%s5 + $0x150] sm:$0xff]
    %v687 = vld [vmem:[%s5 + $0x158] sm:$0xff]
    %v688 = vld [vmem:[%s5 + $0x160] sm:$0xff]
    %v689 = vld [vmem:[%s5 + $0x168] sm:$0xff]
    %v690 = vld [vmem:[%s5 + $0x170] sm:$0xff]
    %v691 = vld [vmem:[%s5 + $0x178] sm:$0xff]
    %v692 = vld [vmem:[%s5 + $0x180] sm:$0xff]
    %v693 = vld [vmem:[%s5 + $0x188] sm:$0xff]
    %v694 = vld [vmem:[%s5 + $0x190] sm:$0xff]
    %v695 = vld [vmem:[%s5 + $0x198] sm:$0xff]
    %v696 = vld [vmem:[%s5 + $0x1a0] sm:$0xff]
    %v697 = vld [vmem:[%s5 + $0x1a8] sm:$0xff]
    %v698 = vld [vmem:[%s5 + $0x1b0] sm:$0xff]
    %v699 = vld [vmem:[%s5 + $0x1b8] sm:$0xff]
    %v700 = vld [vmem:[%s5 + $0x1c0] sm:$0xff]
    %v701 = vld [vmem:[%s5 + $0x1c8] sm:$0xff]
    %v702 = vld [vmem:[%s5 + $0x1d0] sm:$0xff]
    %v703 = vld [vmem:[%s5 + $0x1d8] sm:$0xff]
    %v704 = vld [vmem:[%s5 + $0x1e0] sm:$0xff]
    %v705 = vld [vmem:[%s5 + $0x1e8] sm:$0xff]
    %v706 = vld [vmem:[%s5 + $0x1f0] sm:$0xff]
    %v707 = vld [vmem:[%s5 + $0x1f8] sm:$0xff]
    %v708 = vld [vmem:[%s5 + $0x200] sm:$0xff]
    %v709 = vld [vmem:[%s5 + $0x208] sm:$0xff]
    %v710 = vld [vmem:[%s5 + $0x210] sm:$0xff]
    %v711 = vld [vmem:[%s5 + $0x218] sm:$0xff]
    %v712 = vld [vmem:[%s5 + $0x220] sm:$0xff]
    %v713 = vld [vmem:[%s5 + $0x228] sm:$0xff]
    %v714 = vld [vmem:[%s5 + $0x230] sm:$0xff]
    %v715 = vld [vmem:[%s5 + $0x238] sm:$0xff]
    %v716 = vld [vmem:[%s5 + $0x240] sm:$0xff]
    %v717 = vld [vmem:[%s5 + $0x248] sm:$0xff]
    %v718 = vld [vmem:[%s5 + $0x250] sm:$0xff]
    %v719 = vld [vmem:[%s5 + $0x258] sm:$0xff]
    %v720 = vld [vmem:[%s5 + $0x260] sm:$0xff]
    %v721 = vld [vmem:[%s5 + $0x268] sm:$0xff]
    %v722 = vld [vmem:[%s5 + $0x270] sm:$0xff]
    %v723 = vld [vmem:[%s5 + $0x278] sm:$0xff]
    %v724 = vld [vmem:[%s5 + $0x280] sm:$0xff]
    %v725 = vld [vmem:[%s5 + $0x288] sm:$0xff]
    %v726 = vld [vmem:[%s5 + $0x290] sm:$0xff]
    %v727 = vld [vmem:[%s5 + $0x298] sm:$0xff]
    %v728 = vld [vmem:[%s5 + $0x2a0] sm:$0xff]
    %v729 = vld [vmem:[%s5 + $0x2a8] sm:$0xff]
    %v730 = vld [vmem:[%s5 + $0x2b0] sm:$0xff]
    %v731 = vld [vmem:[%s5 + $0x2b8] sm:$0xff]
    %v732 = vld [vmem:[%s5 + $0x2c0] sm:$0xff]
    %v733 = vld [vmem:[%s5 + $0x2c8] sm:$0xff]
    %v734 = vld [vmem:[%s5 + $0x2d0] sm:$0xff]
    %v735 = vld [vmem:[%s5 + $0x2d8] sm:$0xff]
    %v736 = vld [vmem:[%s5 + $0x2e0] sm:$0xff]
    %v737 = vld [vmem:[%s5 + $0x2e8] sm:$0xff]
    %v738 = vld [vmem:[%s5 + $0x2f0] sm:$0xff]
    %v739 = vld [vmem:[%s5 + $0x2f8] sm:$0xff]
    %v740 = vld [vmem:[%s6] sm:$0x1]
    %v742 = vlaneseq
    %v743 = vshrl.u32 %v742, 7
    %v744 = vsub.s32 0, %v743
    %v745 = vrot.slane %v740, %v744
    %747 = vmatprep.subr.mxu0 0.0
    %748 = vmatpush1.msra.mxu0 %v644
    %749 = vmatprep.subr.mxu0 0.0
    %750 = vmatpush1.msra.mxu0 %v645
    %751 = vmatprep.subr.mxu0 0.0
    %752 = vmatpush1.msra.mxu0 %v646
    %753 = vmatprep.subr.mxu0 0.0
    %754 = vmatpush1.msra.mxu0 %v647
    %755 = vmatprep.subr.mxu0 0.0
    %756 = vmatpush1.msra.mxu0 %v648
    %757 = vmatprep.subr.mxu0 0.0
    %758 = vmatpush1.msra.mxu0 %v649
    %759 = vmatprep.subr.mxu0 0.0
    %760 = vmatpush1.msra.mxu0 %v650
    %761 = vmatprep.subr.mxu0 0.0
    %762 = vmatpush1.msra.mxu0 %v651
    %763 = vmatprep.subr.mxu0 0.0
    %764 = vmatpush1.msra.mxu0 %v652
    %765 = vmatprep.subr.mxu0 0.0
    %766 = vmatpush1.msra.mxu0 %v653
    %767 = vmatprep.subr.mxu0 0.0
    %768 = vmatpush1.msra.mxu0 %v654
    %769 = vmatprep.subr.mxu0 0.0
    %770 = vmatpush1.msra.mxu0 %v655
    %771 = vmatprep.subr.mxu0 0.0
    %772 = vmatpush1.msra.mxu0 %v656
    %773 = vmatprep.subr.mxu0 0.0
    %774 = vmatpush1.msra.mxu0 %v657
    %775 = vmatprep.subr.mxu0 0.0
    %776 = vmatpush1.msra.mxu0 %v658
    %777 = vmatprep.subr.mxu0 0.0
    %778 = vmatpush1.msra.mxu0 %v659
    %779 = vmatprep.subr.mxu0 0.0
    %780 = vmatpush1.msra.mxu0 %v660
    %781 = vmatprep.subr.mxu0 0.0
    %782 = vmatpush1.msra.mxu0 %v661
    %783 = vmatprep.subr.mxu0 0.0
    %784 = vmatpush1.msra.mxu0 %v662
    %785 = vmatprep.subr.mxu0 0.0
    %786 = vmatpush1.msra.mxu0 %v663
    %787 = vmatprep.subr.mxu0 0.0
    %788 = vmatpush1.msra.mxu0 %v664
    %789 = vmatprep.subr.mxu0 0.0
    %790 = vmatpush1.msra.mxu0 %v665
    %791 = vmatprep.subr.mxu0 0.0
    %792 = vmatpush1.msra.mxu0 %v666
    %793 = vmatprep.subr.mxu0 0.0
    %794 = vmatpush1.msra.mxu0 %v667
    %795 = vmatprep.subr.mxu0 0.0
    %796 = vmatpush1.msra.mxu0 %v668
    %797 = vmatprep.subr.mxu0 0.0
    %798 = vmatpush1.msra.mxu0 %v669
    %799 = vmatprep.subr.mxu0 0.0
    %800 = vmatpush1.msra.mxu0 %v670
    %801 = vmatprep.subr.mxu0 0.0
    %802 = vmatpush1.msra.mxu0 %v671
    %803 = vmatprep.subr.mxu0 0.0
    %804 = vmatpush1.msra.mxu0 %v672
    %805 = vmatprep.subr.mxu0 0.0
    %806 = vmatpush1.msra.mxu0 %v673
    %807 = vmatprep.subr.mxu0 0.0
    %808 = vmatpush1.msra.mxu0 %v674
    %809 = vmatprep.subr.mxu0 0.0
    %810 = vmatpush1.msra.mxu0 %v675
    %811 = vmatprep.mubr.f32.mxu0 %v623
    %812 = vmatmul.mubr.f32.gmra.mrb[0].mxu0 %v618
    %v813 = vpop.f32.mrb[0].mxu0
    %v814 = vadd.f32 %v745, %v813
    %v815 = vpop.f32.mrb[0].mxu0
    %816 = vdwg.mxu0
    %817 = vmatprep.subr.mxu0 0.0
    %818 = vmatpush1.msra.mxu0 %v676
    %819 = vmatprep.subr.mxu0 0.0
    %820 = vmatpush1.msra.mxu0 %v677
    %821 = vmatprep.subr.mxu0 0.0
    %822 = vmatpush1.msra.mxu0 %v678
    %823 = vmatprep.subr.mxu0 0.0
    %824 = vmatpush1.msra.mxu0 %v679
    %825 = vmatprep.subr.mxu0 0.0
    %826 = vmatpush1.msra.mxu0 %v680
    %827 = vmatprep.subr.mxu0 0.0
    %828 = vmatpush1.msra.mxu0 %v681
    %829 = vmatprep.subr.mxu0 0.0
    %830 = vmatpush1.msra.mxu0 %v682
    %831 = vmatprep.subr.mxu0 0.0
    %832 = vmatpush1.msra.mxu0 %v683
    %833 = vmatprep.subr.mxu0 0.0
    %834 = vmatpush1.msra.mxu0 %v684
    %835 = vmatprep.subr.mxu0 0.0
    %836 = vmatpush1.msra.mxu0 %v685
    %837 = vmatprep.subr.mxu0 0.0
    %838 = vmatpush1.msra.mxu0 %v686
    %839 = vmatprep.subr.mxu0 0.0
    %840 = vmatpush1.msra.mxu0 %v687
    %841 = vmatprep.subr.mxu0 0.0
    %842 = vmatpush1.msra.mxu0 %v688
    %843 = vmatprep.subr.mxu0 0.0
    %844 = vmatpush1.msra.mxu0 %v689
    %845 = vmatprep.subr.mxu0 0.0
    %846 = vmatpush1.msra.mxu0 %v690
    %847 = vmatprep.subr.mxu0 0.0
    %848 = vmatpush1.msra.mxu0 %v691
    %849 = vmatprep.subr.mxu0 0.0
    %850 = vmatpush1.msra.mxu0 %v692
    %851 = vmatprep.subr.mxu0 0.0
    %852 = vmatpush1.msra.mxu0 %v693
    %853 = vmatprep.subr.mxu0 0.0
    %854 = vmatpush1.msra.mxu0 %v694
    %855 = vmatprep.subr.mxu0 0.0
    %856 = vmatpush1.msra.mxu0 %v695
    %857 = vmatprep.subr.mxu0 0.0
    %858 = vmatpush1.msra.mxu0 %v696
    %859 = vmatprep.subr.mxu0 0.0
    %860 = vmatpush1.msra.mxu0 %v697
    %861 = vmatprep.subr.mxu0 0.0
    %862 = vmatpush1.msra.mxu0 %v698
    %863 = vmatprep.subr.mxu0 0.0
    %864 = vmatpush1.msra.mxu0 %v699
    %865 = vmatprep.subr.mxu0 0.0
    %866 = vmatpush1.msra.mxu0 %v700
    %867 = vmatprep.subr.mxu0 0.0
    %868 = vmatpush1.msra.mxu0 %v701
    %869 = vmatprep.subr.mxu0 0.0
    %870 = vmatpush1.msra.mxu0 %v702
    %871 = vmatprep.subr.mxu0 0.0
    %872 = vmatpush1.msra.mxu0 %v703
    %873 = vmatprep.subr.mxu0 0.0
    %874 = vmatpush1.msra.mxu0 %v704
    %875 = vmatprep.subr.mxu0 0.0
    %876 = vmatpush1.msra.mxu0 %v705
    %877 = vmatprep.subr.mxu0 0.0
    %878 = vmatpush1.msra.mxu0 %v706
    %879 = vmatprep.subr.mxu0 0.0
    %880 = vmatpush1.msra.mxu0 %v707
    %881 = vmatprep.mubr.f32.mxu0 %v633
    %882 = vmatmul.mubr.f32.gmra.mrb[0].mxu0 %v628
    %v883 = vpop.f32.mrb[0].mxu0
    %v884 = vadd.f32 %v814, %v883
    %v885 = vpop.f32.mrb[0].mxu0
    %886 = vdwg.mxu0
    %887 = vmatprep.subr.mxu0 0.0
    %888 = vmatpush1.msra.mxu0 %v708
    %889 = vmatprep.subr.mxu0 0.0
    %890 = vmatpush1.msra.mxu0 %v709
    %891 = vmatprep.subr.mxu0 0.0
    %892 = vmatpush1.msra.mxu0 %v710
    %893 = vmatprep.subr.mxu0 0.0
    %894 = vmatpush1.msra.mxu0 %v711
    %895 = vmatprep.subr.mxu0 0.0
    %896 = vmatpush1.msra.mxu0 %v712
    %897 = vmatprep.subr.mxu0 0.0
    %898 = vmatpush1.msra.mxu0 %v713
    %899 = vmatprep.subr.mxu0 0.0
    %900 = vmatpush1.msra.mxu0 %v714
    %901 = vmatprep.subr.mxu0 0.0
    %902 = vmatpush1.msra.mxu0 %v715
    %903 = vmatprep.subr.mxu0 0.0
    %904 = vmatpush1.msra.mxu0 %v716
    %905 = vmatprep.subr.mxu0 0.0
    %906 = vmatpush1.msra.mxu0 %v717
    %907 = vmatprep.subr.mxu0 0.0
    %908 = vmatpush1.msra.mxu0 %v718
    %909 = vmatprep.subr.mxu0 0.0
    %910 = vmatpush1.msra.mxu0 %v719
    %911 = vmatprep.subr.mxu0 0.0
    %912 = vmatpush1.msra.mxu0 %v720
    %913 = vmatprep.subr.mxu0 0.0
    %914 = vmatpush1.msra.mxu0 %v721
    %915 = vmatprep.subr.mxu0 0.0
    %916 = vmatpush1.msra.mxu0 %v722
    %917 = vmatprep.subr.mxu0 0.0
    %918 = vmatpush1.msra.mxu0 %v723
    %919 = vmatprep.subr.mxu0 0.0
    %920 = vmatpush1.msra.mxu0 %v724
    %921 = vmatprep.subr.mxu0 0.0
    %922 = vmatpush1.msra.mxu0 %v725
    %923 = vmatprep.subr.mxu0 0.0
    %924 = vmatpush1.msra.mxu0 %v726
    %925 = vmatprep.subr.mxu0 0.0
    %926 = vmatpush1.msra.mxu0 %v727
    %927 = vmatprep.subr.mxu0 0.0
    %928 = vmatpush1.msra.mxu0 %v728
    %929 = vmatprep.subr.mxu0 0.0
    %930 = vmatpush1.msra.mxu0 %v729
    %931 = vmatprep.subr.mxu0 0.0
    %932 = vmatpush1.msra.mxu0 %v730
    %933 = vmatprep.subr.mxu0 0.0
    %934 = vmatpush1.msra.mxu0 %v731
    %935 = vmatprep.subr.mxu0 0.0
    %936 = vmatpush1.msra.mxu0 %v732
    %937 = vmatprep.subr.mxu0 0.0
    %938 = vmatpush1.msra.mxu0 %v733
    %939 = vmatprep.subr.mxu0 0.0
    %940 = vmatpush1.msra.mxu0 %v734
    %941 = vmatprep.subr.mxu0 0.0
    %942 = vmatpush1.msra.mxu0 %v735
    %943 = vmatprep.subr.mxu0 0.0
    %944 = vmatpush1.msra.mxu0 %v736
    %945 = vmatprep.subr.mxu0 0.0
    %946 = vmatpush1.msra.mxu0 %v737
    %947 = vmatprep.subr.mxu0 0.0
    %948 = vmatpush1.msra.mxu0 %v738
    %949 = vmatprep.subr.mxu0 0.0
    %950 = vmatpush1.msra.mxu0 %v739
    %951 = vmatprep.mubr.f32.mxu0 %v643
    %952 = vmatmul.mubr.f32.gmra.mrb[0].mxu0 %v638
    %v953 = vpop.f32.mrb[0].mxu0
    %v954 = vadd.f32 %v884, %v953
    %v955 = vpop.f32.mrb[0].mxu0
    %956 = vdwg.mxu0
    %v957 = vmax.f32 %v954, 0.0
    %v958 = vld [vmem:[%s7] sm:$0xff]
    %v959 = vld [vmem:[%s7 + $0x8] sm:$0xff]
    %v960 = vld [vmem:[%s7 + $0x10] sm:$0xff]
    %v961 = vld [vmem:[%s7 + $0x18] sm:$0xff]
    %v962 = vld [vmem:[%s7 + $0x20] sm:$0xff]
    %v963 = vld [vmem:[%s7 + $0x28] sm:$0xff]
    %v964 = vld [vmem:[%s7 + $0x30] sm:$0xff]
    %v965 = vld [vmem:[%s7 + $0x38] sm:$0xff]
    %v966 = vld [vmem:[%s7 + $0x40] sm:$0xff]
    %v967 = vld [vmem:[%s7 + $0x48] sm:$0xff]
    %v968 = vld [vmem:[%s7 + $0x50] sm:$0xff]
    %v969 = vld [vmem:[%s7 + $0x58] sm:$0xff]
    %v970 = vld [vmem:[%s7 + $0x60] sm:$0xff]
    %v971 = vld [vmem:[%s7 + $0x68] sm:$0xff]
    %v972 = vld [vmem:[%s7 + $0x70] sm:$0xff]
    %v973 = vld [vmem:[%s8] sm:$0x1]
    %v975 = vlaneseq
    %v976 = vshrl.u32 %v975, 7
    %v977 = vsub.s32 0, %v976
    %v978 = vrot.slane %v973, %v977
    %vm980 = vcmask 982016
    %v982 = vsel %vm980, %v957, 0
    %984 = vmatprep.subr.mxu0 0.0
    %985 = vmatpush1.msra.mxu0 %v958
    %986 = vmatprep.subr.mxu0 0.0
    %987 = vmatpush1.msra.mxu0 %v959
    %988 = vmatprep.subr.mxu0 0.0
    %989 = vmatpush1.msra.mxu0 %v960
    %990 = vmatprep.subr.mxu0 0.0
    %991 = vmatpush1.msra.mxu0 %v961
    %992 = vmatprep.subr.mxu0 0.0
    %993 = vmatpush1.msra.mxu0 %v962
    %994 = vmatprep.subr.mxu0 0.0
    %995 = vmatpush1.msra.mxu0 %v963
    %996 = vmatprep.subr.mxu0 0.0
    %997 = vmatpush1.msra.mxu0 %v964
    %998 = vmatprep.subr.mxu0 0.0
    %999 = vmatpush1.msra.mxu0 %v965
    %1000 = vmatprep.subr.mxu0 0.0
    %1001 = vmatpush1.msra.mxu0 %v966
    %1002 = vmatprep.subr.mxu0 0.0
    %1003 = vmatpush1.msra.mxu0 %v967
    %1004 = vmatprep.subr.mxu0 0.0
    %1005 = vmatpush1.msra.mxu0 %v968
    %1006 = vmatprep.subr.mxu0 0.0
    %1007 = vmatpush1.msra.mxu0 %v969
    %1008 = vmatprep.subr.mxu0 0.0
    %1009 = vmatpush1.msra.mxu0 %v970
    %1010 = vmatprep.subr.mxu0 0.0
    %1011 = vmatpush1.msra.mxu0 %v971
    %1012 = vmatprep.subr.mxu0 0.0
    %1013 = vmatpush1.msra.mxu0 %v972
    %1014 = vmatprep.subr.mxu0 0.0
    %1015 = vmatpush1.msra.mxu0 0.0
    %1016 = vmatprep.subr.mxu0 0.0
    %1017 = vmatpush1.msra.mxu0 0.0
    %1018 = vmatprep.subr.mxu0 0.0
    %1019 = vmatpush1.msra.mxu0 0.0
    %1020 = vmatprep.subr.mxu0 0.0
    %1021 = vmatpush1.msra.mxu0 0.0
    %1022 = vmatprep.subr.mxu0 0.0
    %1023 = vmatpush1.msra.mxu0 0.0
    %1024 = vmatprep.subr.mxu0 0.0
    %1025 = vmatpush1.msra.mxu0 0.0
    %1026 = vmatprep.subr.mxu0 0.0
    %1027 = vmatpush1.msra.mxu0 0.0
    %1028 = vmatprep.subr.mxu0 0.0
    %1029 = vmatpush1.msra.mxu0 0.0
    %1030 = vmatprep.subr.mxu0 0.0
    %1031 = vmatpush1.msra.mxu0 0.0
    %1032 = vmatprep.subr.mxu0 0.0
    %1033 = vmatpush1.msra.mxu0 0.0
    %1034 = vmatprep.subr.mxu0 0.0
    %1035 = vmatpush1.msra.mxu0 0.0
    %1036 = vmatprep.subr.mxu0 0.0
    %1037 = vmatpush1.msra.mxu0 0.0
    %1038 = vmatprep.subr.mxu0 0.0
    %1039 = vmatpush1.msra.mxu0 0.0
    %1040 = vmatprep.subr.mxu0 0.0
    %1041 = vmatpush1.msra.mxu0 0.0
    %1042 = vmatprep.subr.mxu0 0.0
    %1043 = vmatpush1.msra.mxu0 0.0
    %1044 = vmatprep.subr.mxu0 0.0
    %1045 = vmatpush1.msra.mxu0 0.0
    %1046 = vmatprep.subr.mxu0 0.0
    %1047 = vmatpush1.msra.mxu0 0.0
    %1048 = vmatprep.mubr.f32.mxu0 0.0
    %1049 = vmatmul.mubr.f32.gmra.mrb[0].mxu0 %v982
    %v1050 = vpop.f32.mrb[0].mxu0
    %v1051 = vadd.f32 %v978, %v1050
    %v1052 = vpop.f32.mrb[0].mxu0
    %1053 = vdwg.mxu0
    %v1054 = vmax.f32 %v1051, 0.0
    %v1055 = vld [vmem:[%s9] sm:$0xff]
    %v1056 = vld [vmem:[%s9 + $0x8] sm:$0xff]
    %v1057 = vld [vmem:[%s9 + $0x10] sm:$0xff]
    %v1058 = vld [vmem:[%s9 + $0x18] sm:$0xff]
    %v1059 = vld [vmem:[%s9 + $0x20] sm:$0xff]
    %v1060 = vld [vmem:[%s9 + $0x28] sm:$0xff]
    %v1061 = vld [vmem:[%s9 + $0x30] sm:$0xff]
    %v1062 = vld [vmem:[%s9 + $0x38] sm:$0xff]
    %v1063 = vld [vmem:[%s9 + $0x40] sm:$0xff]
    %v1064 = vld [vmem:[%s9 + $0x48] sm:$0xff]
    %v1065 = vld [vmem:[%s9 + $0x50] sm:$0xf]
    %v1066 = vld [vmem:[%s10] sm:$0x1]
    %v1068 = vlaneseq
    %v1069 = vshrl.u32 %v1068, 7
    %v1070 = vsub.s32 0, %v1069
    %v1071 = vrot.slane %v1066, %v1070
    %vm1073 = vcmask 687104
    %v1075 = vsel %vm1073, %v1054, 0
    %vm1077 = vcmask 1043456
    %v1079 = vsel %vm1077, %v1065, 0
    %1081 = vmatprep.subr.mxu0 0.0
    %1082 = vmatpush1.msra.mxu0 %v1055
    %1083 = vmatprep.subr.mxu0 0.0
    %1084 = vmatpush1.msra.mxu0 %v1056
    %1085 = vmatprep.subr.mxu0 0.0
    %1086 = vmatpush1.msra.mxu0 %v1057
    %1087 = vmatprep.subr.mxu0 0.0
    %1088 = vmatpush1.msra.mxu0 %v1058
    %1089 = vmatprep.subr.mxu0 0.0
    %1090 = vmatpush1.msra.mxu0 %v1059
    %1091 = vmatprep.subr.mxu0 0.0
    %1092 = vmatpush1.msra.mxu0 %v1060
    %1093 = vmatprep.subr.mxu0 0.0
    %1094 = vmatpush1.msra.mxu0 %v1061
    %1095 = vmatprep.subr.mxu0 0.0
    %1096 = vmatpush1.msra.mxu0 %v1062
    %1097 = vmatprep.subr.mxu0 0.0
    %1098 = vmatpush1.msra.mxu0 %v1063
    %1099 = vmatprep.subr.mxu0 0.0
    %1100 = vmatpush1.msra.mxu0 %v1064
    %1101 = vmatprep.subr.mxu0 0.0
    %1102 = vmatpush1.msra.mxu0 %v1079
    %1103 = vmatprep.subr.mxu0 0.0
    %1104 = vmatpush1.msra.mxu0 0.0
    %1105 = vmatprep.subr.mxu0 0.0
    %1106 = vmatpush1.msra.mxu0 0.0
    %1107 = vmatprep.subr.mxu0 0.0
    %1108 = vmatpush1.msra.mxu0 0.0
    %1109 = vmatprep.subr.mxu0 0.0
    %1110 = vmatpush1.msra.mxu0 0.0
    %1111 = vmatprep.subr.mxu0 0.0
    %1112 = vmatpush1.msra.mxu0 0.0
    %1113 = vmatprep.subr.mxu0 0.0
    %1114 = vmatpush1.msra.mxu0 0.0
    %1115 = vmatprep.subr.mxu0 0.0
    %1116 = vmatpush1.msra.mxu0 0.0
    %1117 = vmatprep.subr.mxu0 0.0
    %1118 = vmatpush1.msra.mxu0 0.0
    %1119 = vmatprep.subr.mxu0 0.0
    %1120 = vmatpush1.msra.mxu0 0.0
    %1121 = vmatprep.subr.mxu0 0.0
    %1122 = vmatpush1.msra.mxu0 0.0
    %1123 = vmatprep.subr.mxu0 0.0
    %1124 = vmatpush1.msra.mxu0 0.0
    %1125 = vmatprep.subr.mxu0 0.0
    %1126 = vmatpush1.msra.mxu0 0.0
    %1127 = vmatprep.subr.mxu0 0.0
    %1128 = vmatpush1.msra.mxu0 0.0
    %1129 = vmatprep.subr.mxu0 0.0
    %1130 = vmatpush1.msra.mxu0 0.0
    %1131 = vmatprep.subr.mxu0 0.0
    %1132 = vmatpush1.msra.mxu0 0.0
    %1133 = vmatprep.subr.mxu0 0.0
    %1134 = vmatpush1.msra.mxu0 0.0
    %1135 = vmatprep.subr.mxu0 0.0
    %1136 = vmatpush1.msra.mxu0 0.0
    %1137 = vmatprep.subr.mxu0 0.0
    %1138 = vmatpush1.msra.mxu0 0.0
    %1139 = vmatprep.subr.mxu0 0.0
    %1140 = vmatpush1.msra.mxu0 0.0
    %1141 = vmatprep.subr.mxu0 0.0
    %1142 = vmatpush1.msra.mxu0 0.0
    %1143 = vmatprep.subr.mxu0 0.0
    %1144 = vmatpush1.msra.mxu0 0.0
    %1145 = vmatprep.mubr.f32.mxu0 0.0
    %1146 = vmatmul.mubr.f32.gmra.mrb[0].mxu0 %v1075
    %v1147 = vpop.f32.mrb[0].mxu0
    %v1148 = vadd.f32 %v1071, %v1147
    %v1149 = vpop.f32.mrb[0].mxu0
    %1150 = vdwg.mxu0
    %vm1151 = vcmask 74752
    %1152 = vst.msk [vmem:[#allocation4] sm:$0x3] %vm1151, %v1148
    // Predicated region
    $region46: #{net_forward.1} parent=1 // pred_check
      _
    $region47: #{net_forward.1} parent=1 // pred_check_branch
      %1154 = sbr.rel (0) target = $region49
    $region48: #{net_forward.1} parent=1 // pred_region
      %s1156 = ssub.s32 32, 32
      %1157 = vsyncadd [#allocation5], %s1156
      %s1159 = sshll.u32 [#allocation4], 4
      %s1160 = int_to_ptr.vmem [resolvable:$true] %s1159
      %1162 = dma.vmem_to_hbm [thread:$0]  %s1160, 32, %s11, [#allocation5]
    $region49: #{net_forward.1} parent=1 // pred_fallthru
      _
    // Predicated region
    $region50: #{net_forward.1} parent=1 // pred_check
      _
    $region51: #{net_forward.1} parent=1 // pred_check_branch
      %1164 = sbr.rel (0) target = $region53
    $region52: #{net_forward.1} parent=1 // pred_region
      %1165 = dma.done [#allocation5], 32
    $region53: #{net_forward.1} parent=1 // pred_fallthru
      _
    %1166 = vsyncpa [#allocation5], 1

</llo_original>
